<compile_context>
chip_gen: v7x
topology: tpu7x:2x2x1
jax: 0.10.0
libtpu: 0.0.40
codegen_flags: <defaults>
</compile_context>

<pallas_src>
import functools

import jax
import jax.numpy as jnp
from jax.experimental import pallas as pl
from jax.experimental.pallas import tpu as pltpu


def _round_up(x, m):
    return (x + m - 1) // m * m


# ---------------------------------------------------------------------------
# Pallas kernel: fused 3x3 conv (K-packed single dot) + bias + ReLU
# ---------------------------------------------------------------------------
def _conv3x3_bias_relu_kernel(xm_ref, xh_ref, w_ref, b_ref, o_ref):
    """One (batch, row-tile) grid step.

    xm_ref: (1, th, W+2, Cin)   main row tile of the zero-padded NHWC input
    xh_ref: (1, 2,  W+2, Cin)   2-row bottom halo for this tile
    w_ref : (9*Cin, Cout_p)     K-packed weights, K order = (ky, kx, ci)
    b_ref : (1, Cout_p)         bias (f32)
    o_ref : (1, th*W, Cout_p)   flattened-pixel output tile
    """
    _, th, wp2, cin = xm_ref.shape
    w_sp = wp2 - 2
    m = th * w_sp

    # th+2 input rows needed by this tile (main rows + 2-row halo).
    x4 = jnp.concatenate([xm_ref[0], xh_ref[0]], axis=0)       # (th+2, W+2, Cin)

    # Build the tap-packed LHS once per tile: column block tap = 3*ky + kx
    # holds the Cin channels of the (ky, kx)-shifted window.
    parts = []
    for ky in range(3):
        for kx in range(3):
            win = x4[ky:ky + th, kx:kx + w_sp, :]               # (th, W, Cin) static slice
            parts.append(win.reshape(m, cin))                   # leading-dim merge only
    lhs = jnp.concatenate(parts, axis=-1)                       # (M, 9*Cin)

    # Single MXU pass with K = 9*Cin; f32 accumulation; result goes straight
    # to this step's output tile (no cross-iteration accumulator kept live).
    acc = jnp.dot(lhs, w_ref[...], preferred_element_type=jnp.float32)
    acc = acc + b_ref[...]
    o_ref[0] = jnp.maximum(acc, 0.0).astype(o_ref.dtype)


# ---------------------------------------------------------------------------
# Row-tile selection (conservative VMEM budget, multiple of 8)
# ---------------------------------------------------------------------------
def _pick_row_tile(h, w_sp, cin, cout_p, csize, osize,
                   vmem_budget_bytes=12 << 20):
    cin_phys = _round_up(cin, 128)           # lane-padded width in VMEM
    cout_phys = _round_up(max(cout_p, 1), 128)
    per_row = (2 * (w_sp + 2) * cin_phys * csize   # double-buffered input block
               + w_sp * 9 * cin * csize            # tap-packed LHS
               + w_sp * cout_phys * 4              # f32 matmul result
               + 2 * w_sp * cout_phys * osize)     # double-buffered output block
    th = int(vmem_budget_bytes // max(per_row, 1))
    th = min(th, 256, _round_up(h, 8))
    th = max(8, th // 8 * 8)
    return th


# ---------------------------------------------------------------------------
# Wrapper: layout plumbing only (single boundary transpose each way)
# ---------------------------------------------------------------------------
def conv3x3_relu(x_nchw, w, b, *, compute_dtype=jnp.float32, row_tile=None):
    """x: (N, Cin, H, W); w: (Cout, Cin, 3, 3); b: (Cout,) -> (N, Cout, H, W)."""
    n, cin, h, w_sp = x_nchw.shape
    cout = w.shape[0]
    out_dtype = x_nchw.dtype
    csize = jnp.dtype(compute_dtype).itemsize
    osize = jnp.dtype(out_dtype).itemsize

    # Lane-dense (128) output padding only pays off once Cout >= 128; below
    # that, the unpadded output writes far fewer HBM bytes (masked stores).
    cout_p = _round_up(cout, 128) if cout >= 128 else cout

    th = _pick_row_tile(h, w_sp, cin, cout_p, csize, osize) \
        if row_tile is None else int(row_tile)
    assert th >= 8 and th % 8 == 0, "row_tile must be a multiple of 8"

    hp = _round_up(h, th)                 # pad H so every tile is full
    nt = hp // th
    m_tile = th * w_sp

    # NCHW -> NHWC once; zero-pad: conv's padding=1 plus the H round-up rows.
    x = jnp.transpose(x_nchw, (0, 2, 3, 1)).astype(compute_dtype)
    xp = jnp.pad(x, ((0, 0), (1, 1 + hp - h), (1, 1), (0, 0)))

    # Bottom 2-row halo of every row tile as its own array so both inputs use
    # plain Blocked indexing (no overlapping blocks); duplicates only 2/th of
    # the activation bytes.
    halo = jnp.concatenate(
        [xp[:, (j + 1) * th:(j + 1) * th + 2] for j in range(nt)], axis=1)

    # (Cout, Cin, 3, 3) -> K-packed (9*Cin, Cout_p), K order (ky, kx, ci).
    w_packed = jnp.transpose(w, (2, 3, 1, 0)).reshape(9 * cin, cout)
    if cout_p != cout:
        w_packed = jnp.pad(w_packed, ((0, 0), (0, cout_p - cout)))
    w_packed = w_packed.astype(compute_dtype)
    b_p = jnp.pad(b, (0, cout_p - cout)) if cout_p != cout else b
    b_p = b_p.astype(jnp.float32).reshape(1, cout_p)

    cost = pl.CostEstimate(
        flops=2 * n * hp * w_sp * 9 * cin * cout_p,
        transcendentals=0,
        bytes_accessed=(xp.size * csize + halo.size * csize
                        + w_packed.size * csize + b_p.size * 4
                        + n * hp * w_sp * cout_p * osize))

    out = pl.pallas_call(
        _conv3x3_bias_relu_kernel,
        out_shape=jax.ShapeDtypeStruct((n, nt * m_tile, cout_p), out_dtype),
        grid_spec=pltpu.PrefetchScalarGridSpec(
            num_scalar_prefetch=0,
            grid=(n, nt),
            in_specs=[
                # Main row tile and its 2-row bottom halo.
                pl.BlockSpec((1, th, w_sp + 2, cin), lambda i, j: (i, j, 0, 0)),
                pl.BlockSpec((1, 2, w_sp + 2, cin), lambda i, j: (i, j, 0, 0)),
                # Constant weight/bias blocks: same index every step -> fetched
                # once and resident in VMEM across the whole grid.
                pl.BlockSpec((9 * cin, cout_p), lambda i, j: (0, 0)),
                pl.BlockSpec((1, cout_p), lambda i, j: (0, 0)),
            ],
            out_specs=pl.BlockSpec((1, m_tile, cout_p), lambda i, j: (i, j, 0)),
        ),
        compiler_params=pltpu.CompilerParams(
            # Both axes are independent -> megacore / v7x dual-TC can split
            # over batch OR row tiles (works even at N=1).
            dimension_semantics=("parallel", "parallel")),
        cost_estimate=cost,
    )(xp, halo, w_packed, b_p)

    # Drop the H round-up rows and the (possible) Cout padding; restore NCHW.
    y = out.reshape(n, hp, w_sp, cout_p)[:, :h, :, :cout]
    return jnp.transpose(y, (0, 3, 1, 2)).astype(out_dtype)


# ---------------------------------------------------------------------------
# Pure-JAX reference (correctness check only)
# ---------------------------------------------------------------------------
def conv3x3_relu_ref(x, w, b):
    y = jax.lax.conv_general_dilated(
        x, w, window_strides=(1, 1), padding=((1, 1), (1, 1)),
        dimension_numbers=("NCHW", "OIHW", "NCHW"))
    return jax.nn.relu(y + b[None, :, None, None])


if __name__ == "__main__":
    def check(n, cin, cout, h, w_sp, row_tile=None, tol=1e-4):
        key = jax.random.PRNGKey(0)
        k1, k2, kx = jax.random.split(key, 3)
        wgt = 0.1 * jax.random.normal(k1, (cout, cin, 3, 3), jnp.float32)
        bias = 0.1 * jax.random.normal(k2, (cout,), jnp.float32)
        x = jax.random.normal(kx, (n, cin, h, w_sp), jnp.float32)
        fn = jax.jit(functools.partial(conv3x3_relu, row_tile=row_tile))
        out = jax.block_until_ready(fn(x, wgt, bias))
        ref = jax.block_until_ready(conv3x3_relu_ref(x, wgt, bias))
        assert out.shape == ref.shape, (out.shape, ref.shape)
        err = float(jnp.max(jnp.abs(out - ref)))
        assert err < tol, f"max abs err {err} for shape {out.shape}"

    # ConvRelu(in_=4, out=8) on batch=2, spatial 16x16 (single row tile).
    check(2, 4, 8, 16, 16)
    # Multi-row-tile + ragged-H path: H=20 -> padded to 24, 3 tiles of 8 rows,
    # exercises the halo BlockSpec and the H round-up slicing.
    check(1, 4, 8, 20, 16, row_tile=8)

    print("KERNEL_OK")
</pallas_src>

<mosaic_0001>
module attributes {stable_mosaic.version = 11 : i64} {
  func.func @_conv3x3_bias_relu_kernel(%arg0: i32, %arg1: i32, %arg2: memref<1x16x18x4xf32, #tpu.memory_space<vmem>>, %arg3: memref<1x2x18x4xf32, #tpu.memory_space<vmem>>, %arg4: memref<36x8xf32, #tpu.memory_space<vmem>>, %arg5: memref<1x8xf32, #tpu.memory_space<vmem>>, %arg6: memref<1x256x8xf32, #tpu.memory_space<vmem>>) attributes {dimension_semantics = [#tpu.dimension_semantics<parallel>, #tpu.dimension_semantics<parallel>], iteration_bounds = array<i64: 2, 1>, scalar_prefetch = 0 : i64, scratch_operands = 0 : i64, tpu.core_type = #tpu.core_type<tc>, window_params = [{transform_indices = @transform_0, window_bounds = array<i64: 1, 16, 18, 4>}, {transform_indices = @transform_1, window_bounds = array<i64: 1, 2, 18, 4>}, {pipeline_mode = #tpu.pipeline_mode<synchronous>, transform_indices = @transform_2, window_bounds = array<i64: 36, 8>}, {pipeline_mode = #tpu.pipeline_mode<synchronous>, transform_indices = @transform_3, window_bounds = array<i64: 1, 8>}, {transform_indices = @transform_4, window_bounds = array<i64: 1, 256, 8>}]} {
    %c0 = arith.constant 0 : index
    %c0_0 = arith.constant 0 : index
    %c0_1 = arith.constant 0 : index
    %c0_2 = arith.constant 0 : index
    %0 = vector.load %arg2[%c0, %c0_0, %c0_1, %c0_2] : memref<1x16x18x4xf32, #tpu.memory_space<vmem>>, vector<1x16x18x4xf32>
    %1 = vector.shape_cast %0 : vector<1x16x18x4xf32> to vector<16x18x4xf32>
    %c0_3 = arith.constant 0 : index
    %c0_4 = arith.constant 0 : index
    %c0_5 = arith.constant 0 : index
    %c0_6 = arith.constant 0 : index
    %2 = vector.load %arg3[%c0_3, %c0_4, %c0_5, %c0_6] : memref<1x2x18x4xf32, #tpu.memory_space<vmem>>, vector<1x2x18x4xf32>
    %3 = vector.shape_cast %2 : vector<1x2x18x4xf32> to vector<2x18x4xf32>
    %4 = tpu.concatenate %1, %3 in 0 : vector<16x18x4xf32>, vector<2x18x4xf32> -> vector<18x18x4xf32>
    %5 = vector.extract_strided_slice %4 {offsets = [0, 0, 0], sizes = [16, 16, 4], strides = [1, 1, 1]} : vector<18x18x4xf32> to vector<16x16x4xf32>
    %6 = vector.shape_cast %5 : vector<16x16x4xf32> to vector<256x4xf32>
    %7 = vector.extract_strided_slice %4 {offsets = [0, 1, 0], sizes = [16, 16, 4], strides = [1, 1, 1]} : vector<18x18x4xf32> to vector<16x16x4xf32>
    %8 = vector.shape_cast %7 : vector<16x16x4xf32> to vector<256x4xf32>
    %9 = vector.extract_strided_slice %4 {offsets = [0, 2, 0], sizes = [16, 16, 4], strides = [1, 1, 1]} : vector<18x18x4xf32> to vector<16x16x4xf32>
    %10 = vector.shape_cast %9 : vector<16x16x4xf32> to vector<256x4xf32>
    %11 = vector.extract_strided_slice %4 {offsets = [1, 0, 0], sizes = [16, 16, 4], strides = [1, 1, 1]} : vector<18x18x4xf32> to vector<16x16x4xf32>
    %12 = vector.shape_cast %11 : vector<16x16x4xf32> to vector<256x4xf32>
    %13 = vector.extract_strided_slice %4 {offsets = [1, 1, 0], sizes = [16, 16, 4], strides = [1, 1, 1]} : vector<18x18x4xf32> to vector<16x16x4xf32>
    %14 = vector.shape_cast %13 : vector<16x16x4xf32> to vector<256x4xf32>
    %15 = vector.extract_strided_slice %4 {offsets = [1, 2, 0], sizes = [16, 16, 4], strides = [1, 1, 1]} : vector<18x18x4xf32> to vector<16x16x4xf32>
    %16 = vector.shape_cast %15 : vector<16x16x4xf32> to vector<256x4xf32>
    %17 = vector.extract_strided_slice %4 {offsets = [2, 0, 0], sizes = [16, 16, 4], strides = [1, 1, 1]} : vector<18x18x4xf32> to vector<16x16x4xf32>
    %18 = vector.shape_cast %17 : vector<16x16x4xf32> to vector<256x4xf32>
    %19 = vector.extract_strided_slice %4 {offsets = [2, 1, 0], sizes = [16, 16, 4], strides = [1, 1, 1]} : vector<18x18x4xf32> to vector<16x16x4xf32>
    %20 = vector.shape_cast %19 : vector<16x16x4xf32> to vector<256x4xf32>
    %21 = vector.extract_strided_slice %4 {offsets = [2, 2, 0], sizes = [16, 16, 4], strides = [1, 1, 1]} : vector<18x18x4xf32> to vector<16x16x4xf32>
    %22 = vector.shape_cast %21 : vector<16x16x4xf32> to vector<256x4xf32>
    %23 = tpu.concatenate %6, %8, %10, %12, %14, %16, %18, %20, %22 in 1 : vector<256x4xf32>, vector<256x4xf32>, vector<256x4xf32>, vector<256x4xf32>, vector<256x4xf32>, vector<256x4xf32>, vector<256x4xf32>, vector<256x4xf32>, vector<256x4xf32> -> vector<256x36xf32>
    %c0_7 = arith.constant 0 : index
    %c0_8 = arith.constant 0 : index
    %24 = vector.load %arg4[%c0_7, %c0_8] : memref<36x8xf32, #tpu.memory_space<vmem>>, vector<36x8xf32>
    %cst = arith.constant dense<0.000000e+00> : vector<256x8xf32>
    %25 = tpu.matmul %23, %24, %cst {dimension_numbers = #tpu.dot_dimension_numbers<[1], [0], [0], [1], [0, 0, 1, 1], [], []>} : vector<256x36xf32>, vector<36x8xf32>, vector<256x8xf32> -> vector<256x8xf32>
    %c0_9 = arith.constant 0 : index
    %c0_10 = arith.constant 0 : index
    %26 = vector.load %arg5[%c0_9, %c0_10] : memref<1x8xf32, #tpu.memory_space<vmem>>, vector<1x8xf32>
    %27 = vector.broadcast %26 : vector<1x8xf32> to vector<256x8xf32>
    %28 = arith.addf %25, %27 : vector<256x8xf32>
    %cst_11 = arith.constant 0.000000e+00 : f32
    %29 = vector.broadcast %cst_11 : f32 to vector<256x8xf32>
    %30 = arith.maximumf %28, %29 : vector<256x8xf32>
    %c0_12 = arith.constant 0 : index
    %c0_13 = arith.constant 0 : index
    %c0_14 = arith.constant 0 : index
    %31 = vector.load %arg6[%c0_12, %c0_13, %c0_14] : memref<1x256x8xf32, #tpu.memory_space<vmem>>, vector<1x256x8xf32>
    %32 = vector.shape_cast %31 : vector<1x256x8xf32> to vector<256x8xf32>
    %33 = vector.shape_cast %30 : vector<256x8xf32> to vector<1x256x8xf32>
    tpu.vector_store %arg6[%c0_12, %c0_13, %c0_14], %33 {strides = array<i32>} : memref<1x256x8xf32, #tpu.memory_space<vmem>>, vector<1x256x8xf32>,
    return
  }
  func.func @transform_0(%arg0: i32, %arg1: i32) -> (i32, i32, i32, i32) {
    %c0_i32 = arith.constant 0 : i32
    %c0_i32_0 = arith.constant 0 : i32
    %c0_i32_1 = arith.constant 0 : i32
    return %arg0, %arg1, %c0_i32, %c0_i32_0 : i32, i32, i32, i32
  }
  func.func @transform_1(%arg0: i32, %arg1: i32) -> (i32, i32, i32, i32) {
    %c0_i32 = arith.constant 0 : i32
    %c0_i32_0 = arith.constant 0 : i32
    %c0_i32_1 = arith.constant 0 : i32
    return %arg0, %arg1, %c0_i32, %c0_i32_0 : i32, i32, i32, i32
  }
  func.func @transform_2(%arg0: i32, %arg1: i32) -> (i32, i32) {
    %c0_i32 = arith.constant 0 : i32
    %c0_i32_0 = arith.constant 0 : i32
    %c0_i32_1 = arith.constant 0 : i32
    return %c0_i32, %c0_i32_0 : i32, i32
  }
  func.func @transform_3(%arg0: i32, %arg1: i32) -> (i32, i32) {
    %c0_i32 = arith.constant 0 : i32
    %c0_i32_0 = arith.constant 0 : i32
    %c0_i32_1 = arith.constant 0 : i32
    return %c0_i32, %c0_i32_0 : i32, i32
  }
  func.func @transform_4(%arg0: i32, %arg1: i32) -> (i32, i32, i32) {
    %c0_i32 = arith.constant 0 : i32
    %c0_i32_0 = arith.constant 0 : i32
    return %arg0, %arg1, %c0_i32 : i32, i32, i32
  }
}

</mosaic_0001>

<llo_original>
// kernel: conv3x3_relu.1
$region0: #{conv3x3_relu.1}
  #allocation0 [shape = 'u32[]', space=smem, size = 0x4, offset = 0x4, fixed_abs, tag = 'smem constant byte address 0x4 - core index']
  #allocation1 [shape = 'u32[144,128]{1,0:T(1,128)}', space=vmem, size = 0x12000, scoped, tag = 'internal scratch']
  %s0 = inlined_call_operand.vmem [shape: f32[2,18,18,4], index: 0, kind: input, shape index: {}]
  %s1 = inlined_call_operand.vmem [shape: f32[2,2,18,4], index: 1, kind: input, shape index: {}]
  %s2 = inlined_call_operand.vmem [shape: f32[36,8], index: 2, kind: input, shape index: {}]
  %s3 = inlined_call_operand.vmem [shape: f32[1,8], index: 3, kind: input, shape index: {}]
  %s4 = inlined_call_operand.vmem [shape: f32[2,256,8], index: 4, kind: output, shape index: {}]
  %s5 = sld [smem:[#allocation0]]
  $region49: #{conv3x3_relu.1} parent=0
    _
  %s7 = ssub.s32 1, %s5
  %s8 = scalar_select 0, %s7, %s5
  loop: start=0, step=1, limit=4
  $region2: #{conv3x3_relu.1} parent=0 // loop_pre_header
    _
  $region3: #{conv3x3_relu.1} parent=0 // loop_header
    %s10 = sphi 0, %s14
    %p11 = scmp.ge.s32.totalorder %s10, 4
    %s17 = sphi 0, %s29
    %s18 = sphi 0, %s25
    %s19 = sphi 0, %s17
    %s20 = sphi 0, %s18
    %s21 = sphi 0, %s19
    %s22 = sphi 0, %s20
    %s34 = sphi 0, %s36
    %s37 = sphi 0, %s34
    %s38 = sphi 0, %s37
    %s54 = sphi 0, %s38
    %s62 = sphi 0, %s64
    %s65 = sphi 0, %s62
    %s66 = sphi 0, %s65
    %s82 = sphi 0, %s66
    %s86 = sphi 0, %s86
    %s88 = sphi 0, %s86
    %s89 = sphi 0, %s88
    %s103 = sphi 0, %s89
    %s107 = sphi 0, %s107
    %s109 = sphi 0, %s107
    %s110 = sphi 0, %s109
    %s124 = sphi 0, %s110
    %s132 = sphi 0, %s134
    %s135 = sphi 0, %s132
    %s136 = sphi 0, %s135
    %s152 = sphi 0, %s136
  $region4: #{conv3x3_relu.1} parent=0 // loop_header_branch
    %13 = sbr.rel (%p11) target = $region8
  $region5: #{conv3x3_relu.1} parent=0 // loop_body
    %s15 = ssub.s32 %s10, 1
    %s16 = ssub.s32 %s10, 2
    %s23 = sadd.s32 1, %s18
    %p24 = scmp.ge.s32.totalorder %s23, 1
    %s25 = scalar_select %p24, 0, %s23
    %s26 = sadd.s32 1, %s17
    %s27 = scalar_select %p24, %s26, %s17
    %p28 = scmp.ge.s32.totalorder %s27, 2
    %s29 = scalar_select %p28, 0, %s27
    %s30 = ssub.s32 %s17, %s29
    %s31 = ssub.s32 %s18, %s25
    %s32 = sor.u32 %s30, %s31
    %p33 = scmp.eq.s32.totalorder %s32, 0
    %s35 = sadd.s32 %s34, 1
    %s36 = scalar_select %p33, %s34, %s35
    %p39 = pneg %p33
    %p40 = scmp.eq.s32.totalorder %s10, 1
    %p41 = por %p39, %p40
    %p42 = scmp.ne.s32.totalorder %s34, %s37
    %p43 = scmp.eq.s32.totalorder %s10, 0
    %p44 = por %p42, %p43
    %p45 = scmp.ne.s32.totalorder %s34, %s37
    %p46 = scmp.eq.s32.totalorder %s15, 1
    %p47 = por %p45, %p46
    %p48 = scmp.ne.s32.totalorder %s37, %s38
    %p49 = scmp.eq.s32.totalorder %s15, 0
    %p50 = por %p48, %p49
    %p51 = scmp.ne.s32.totalorder %s37, %s38
    %p52 = scmp.eq.s32.totalorder %s16, 1
    %p53 = por %p51, %p52
    %p55 = scmp.ne.s32.totalorder %s38, %s54
    %p56 = scmp.eq.s32.totalorder %s16, 0
    %p57 = por %p55, %p56
    %s58 = ssub.s32 %s17, %s29
    %s59 = ssub.s32 %s18, %s25
    %s60 = sor.u32 %s58, %s59
    %p61 = scmp.eq.s32.totalorder %s60, 0
    %s63 = sadd.s32 %s62, 1
    %s64 = scalar_select %p61, %s62, %s63
    %p67 = pneg %p61
    %p68 = scmp.eq.s32.totalorder %s10, 1
    %p69 = por %p67, %p68
    %p70 = scmp.ne.s32.totalorder %s62, %s65
    %p71 = scmp.eq.s32.totalorder %s10, 0
    %p72 = por %p70, %p71
    %p73 = scmp.ne.s32.totalorder %s62, %s65
    %p74 = scmp.eq.s32.totalorder %s15, 1
    %p75 = por %p73, %p74
    %p76 = scmp.ne.s32.totalorder %s65, %s66
    %p77 = scmp.eq.s32.totalorder %s15, 0
    %p78 = por %p76, %p77
    %p79 = scmp.ne.s32.totalorder %s65, %s66
    %p80 = scmp.eq.s32.totalorder %s16, 1
    %p81 = por %p79, %p80
    %p83 = scmp.ne.s32.totalorder %s66, %s82
    %p84 = scmp.eq.s32.totalorder %s16, 0
    %p85 = por %p83, %p84
    %s87 = sadd.s32 %s86, 1
    %p90 = scmp.eq.s32.totalorder %s10, 1
    %p91 = scmp.ne.s32.totalorder %s86, %s88
    %p92 = scmp.eq.s32.totalorder %s10, 0
    %p93 = por %p91, %p92
    %p94 = scmp.ne.s32.totalorder %s86, %s88
    %p95 = scmp.eq.s32.totalorder %s15, 1
    %p96 = por %p94, %p95
    %p97 = scmp.ne.s32.totalorder %s88, %s89
    %p98 = scmp.eq.s32.totalorder %s15, 0
    %p99 = por %p97, %p98
    %p100 = scmp.ne.s32.totalorder %s88, %s89
    %p101 = scmp.eq.s32.totalorder %s16, 1
    %p102 = por %p100, %p101
    %p104 = scmp.ne.s32.totalorder %s89, %s103
    %p105 = scmp.eq.s32.totalorder %s16, 0
    %p106 = por %p104, %p105
    %s108 = sadd.s32 %s107, 1
    %p111 = scmp.eq.s32.totalorder %s10, 1
    %p112 = scmp.ne.s32.totalorder %s107, %s109
    %p113 = scmp.eq.s32.totalorder %s10, 0
    %p114 = por %p112, %p113
    %p115 = scmp.ne.s32.totalorder %s107, %s109
    %p116 = scmp.eq.s32.totalorder %s15, 1
    %p117 = por %p115, %p116
    %p118 = scmp.ne.s32.totalorder %s109, %s110
    %p119 = scmp.eq.s32.totalorder %s15, 0
    %p120 = por %p118, %p119
    %p121 = scmp.ne.s32.totalorder %s109, %s110
    %p122 = scmp.eq.s32.totalorder %s16, 1
    %p123 = por %p121, %p122
    %p125 = scmp.ne.s32.totalorder %s110, %s124
    %p126 = scmp.eq.s32.totalorder %s16, 0
    %p127 = por %p125, %p126
    %s128 = ssub.s32 %s17, %s29
    %s129 = ssub.s32 %s18, %s25
    %s130 = sor.u32 %s128, %s129
    %p131 = scmp.eq.s32.totalorder %s130, 0
    %s133 = sadd.s32 %s132, 1
    %s134 = scalar_select %p131, %s132, %s133
    %p137 = pneg %p131
    %p138 = scmp.eq.s32.totalorder %s10, 1
    %p139 = por %p137, %p138
    %p140 = scmp.ne.s32.totalorder %s132, %s135
    %p141 = scmp.eq.s32.totalorder %s10, 0
    %p142 = por %p140, %p141
    %p143 = scmp.ne.s32.totalorder %s132, %s135
    %p144 = scmp.eq.s32.totalorder %s15, 1
    %p145 = por %p143, %p144
    %p146 = scmp.ne.s32.totalorder %s135, %s136
    %p147 = scmp.eq.s32.totalorder %s15, 0
    %p148 = por %p146, %p147
    %p149 = scmp.ne.s32.totalorder %s135, %s136
    %p150 = scmp.eq.s32.totalorder %s16, 1
    %p151 = por %p149, %p150
    %p153 = scmp.ne.s32.totalorder %s136, %s152
    %p154 = scmp.eq.s32.totalorder %s16, 0
    %p155 = por %p153, %p154
    %p156 = scmp.le.s32.totalorder 1, %s10
    %p157 = scmp.lt.s32.totalorder %s10, 3
    %p158 = pnand %p156, %p157
    %p159 = pneg %p158
    // Predicated region
    $region9: #{conv3x3_relu.1} parent=5 // pred_check
      _
    $region10: #{conv3x3_relu.1} parent=5 // pred_check_branch
      %161 = sbr.rel (%p158) target = $region12
    $region11: #{conv3x3_relu.1} parent=5 // pred_region
      %s162 = ssub.s32 %s10, 1
      // Predicated region
      $region13: #{conv3x3_relu.1} parent=11 // pred_check
        %p163 = pneg %p99
      $region14: #{conv3x3_relu.1} parent=11 // pred_check_branch
        %165 = sbr.rel (%p163) target = $region16
      $region15: #{conv3x3_relu.1} parent=11 // pred_region
        _
      $region16: #{conv3x3_relu.1} parent=11 // pred_fallthru
        _
      // Predicated region
      $region17: #{conv3x3_relu.1} parent=11 // pred_check
        %p166 = pneg %p120
      $region18: #{conv3x3_relu.1} parent=11 // pred_check_branch
        %168 = sbr.rel (%p166) target = $region20
      $region19: #{conv3x3_relu.1} parent=11 // pred_region
        _
      $region20: #{conv3x3_relu.1} parent=11 // pred_fallthru
        _
    $region12: #{conv3x3_relu.1} parent=5 // pred_fallthru
      _
    %p169 = scmp.lt.s32.totalorder %s10, 2
    // Predicated region
    $region21: #{conv3x3_relu.1} parent=5 // pred_check
      %p170 = pneg %p169
    $region22: #{conv3x3_relu.1} parent=5 // pred_check_branch
      %172 = sbr.rel (%p170) target = $region24
    $region23: #{conv3x3_relu.1} parent=5 // pred_region
      // Predicated region
      $region25: #{conv3x3_relu.1} parent=23 // pred_check
        %p173 = pneg %p44
      $region26: #{conv3x3_relu.1} parent=23 // pred_check_branch
        %175 = sbr.rel (%p173) target = $region28
      $region27: #{conv3x3_relu.1} parent=23 // pred_region
        %s176 = smul.u32 16, %s18
        %s177 = ssub.s32 18, %s176
        %p178 = scmp.lt.s32.totalorder %s177, 16
        %s179 = scalar_select %p178, %s177, 16
        %s180 = smul.u32 128, %s179
        %s181 = smul.u32 %s180, 3
        %p182 = scmp.lt.s32.totalorder %s17, 1
        %s183 = scalar_select %p182, %s17, 1
        %p184 = scmp.lt.s32.totalorder %s176, 17
        %s185 = scalar_select %p184, %s176, 17
        %s186 = smul.addr %s185, 3
        %s187 = smul.addr %s183, 54
        %s188 = sadd.s32 %s186, %s187
        %s189 = smul.addr %s188, 8
        %s190 = scalar_lea.vmem %s0, %s189
        %s191 = smul.u32 16, %s18
        %s192 = ssub.s32 18, %s191
        %p193 = scmp.lt.s32.totalorder %s192, 16
        %s194 = scalar_select %p193, %s192, 16
        %s195 = smul.u32 128, %s194
        %s196 = smul.u32 %s195, 3
      $region28: #{conv3x3_relu.1} parent=23 // pred_fallthru
        _
      // Predicated region
      $region29: #{conv3x3_relu.1} parent=23 // pred_check
        %p197 = pneg %p72
      $region30: #{conv3x3_relu.1} parent=23 // pred_check_branch
        %199 = sbr.rel (%p197) target = $region32
      $region31: #{conv3x3_relu.1} parent=23 // pred_region
        %s200 = smul.u32 2, %s18
        %p201 = scmp.lt.s32.totalorder %s17, 1
        %s202 = scalar_select %p201, %s17, 1
        %p203 = scmp.lt.s32.totalorder %s200, 1
        %s204 = scalar_select %p203, %s200, 1
        %s205 = smul.addr %s204, 3
        %s206 = smul.addr %s202, 6
        %s207 = sadd.s32 %s205, %s206
        %s208 = smul.addr %s207, 8
        %s209 = scalar_lea.vmem %s1, %s208
        %s210 = smul.u32 2, %s18
      $region32: #{conv3x3_relu.1} parent=23 // pred_fallthru
        _
    $region24: #{conv3x3_relu.1} parent=5 // pred_fallthru
      _
    %p211 = scmp.le.s32.totalorder 1, %s10
    %p212 = scmp.lt.s32.totalorder %s10, 3
    %p213 = pnand %p211, %p212
    %p214 = pneg %p213
    // Predicated region
    $region33: #{conv3x3_relu.1} parent=5 // pred_check
      _
    $region34: #{conv3x3_relu.1} parent=5 // pred_check_branch
      %216 = sbr.rel (%p213) target = $region36
    $region35: #{conv3x3_relu.1} parent=5 // pred_region
      %s217 = ssub.s32 %s10, 1
      %s218 = smul.u32 16, %s20
      %s219 = ssub.s32 18, %s218
      %p220 = scmp.lt.s32.totalorder %s219, 16
      %s221 = scalar_select %p220, %s219, 16
      %s222 = smul.u32 128, %s221
      %s223 = smul.u32 %s222, 3
      %p224 = scmp.lt.s32.totalorder %s19, 1
      %s225 = scalar_select %p224, %s19, 1
      %p226 = scmp.lt.s32.totalorder %s218, 17
      %s227 = scalar_select %p226, %s218, 17
      %s228 = smul.addr %s227, 3
      %s229 = smul.addr %s225, 54
      %s230 = sadd.s32 %s228, %s229
      %s231 = smul.addr %s230, 8
      %s232 = scalar_lea.vmem %s0, %s231
      %p233 = pneg %p50
      %p234 = pneg %p47
      %s235 = smul.u32 2, %s20
      %p236 = scmp.lt.s32.totalorder %s19, 1
      %s237 = scalar_select %p236, %s19, 1
      %p238 = scmp.lt.s32.totalorder %s235, 1
      %s239 = scalar_select %p238, %s235, 1
      %s240 = smul.addr %s239, 3
      %s241 = smul.addr %s237, 6
      %s242 = sadd.s32 %s240, %s241
      %s243 = smul.addr %s242, 8
      %s244 = scalar_lea.vmem %s1, %s243
      %p245 = pneg %p78
      %p246 = pneg %p75
      %p247 = pneg %p99
      %p248 = pneg %p96
      %p249 = pneg %p120
      %p250 = pneg %p117
      %p251 = pneg %p148
      %p252 = pneg %p145
      %s253 = smul.u32 32, %s20
      %p254 = scmp.lt.s32.totalorder %s19, 1
      %s255 = scalar_select %p254, %s19, 1
      %p256 = scmp.lt.s32.totalorder %s253, 31
      %s257 = scalar_select %p256, %s253, 31
      %s258 = smul.addr %s255, 32
      %s259 = sadd.s32 %s257, %s258
      %s260 = smul.addr %s259, 8
      %s261 = scalar_lea.vmem %s4, %s260
      %s262 = smul.u32 16, %s20
      %s263 = ssub.s32 18, %s262
      %p264 = scmp.lt.s32.totalorder %s263, 16
      %s265 = scalar_select %p264, %s263, 16
      %s266 = smul.u32 128, %s265
      %s267 = smul.u32 %s266, 3
      %p268 = scmp.lt.s32.totalorder %s19, 1
      %s269 = scalar_select %p268, %s19, 1
      %p270 = scmp.lt.s32.totalorder %s262, 17
      %s271 = scalar_select %p270, %s262, 17
      %s272 = smul.addr %s271, 3
      %s273 = smul.addr %s269, 54
      %s274 = sadd.s32 %s272, %s273
      %s275 = smul.addr %s274, 8
      %s276 = scalar_lea.vmem %s0, %s275
      %s277 = smul.u32 16, %s20
      %s278 = ssub.s32 18, %s277
      %p279 = scmp.lt.s32.totalorder %s278, 16
      %s280 = scalar_select %p279, %s278, 16
      %s281 = smul.u32 128, %s280
      %s282 = smul.u32 %s281, 3
      %s283 = smul.u32 2, %s20
      %p284 = scmp.lt.s32.totalorder %s19, 1
      %s285 = scalar_select %p284, %s19, 1
      %p286 = scmp.lt.s32.totalorder %s283, 1
      %s287 = scalar_select %p286, %s283, 1
      %s288 = smul.addr %s287, 3
      %s289 = smul.addr %s285, 6
      %s290 = sadd.s32 %s288, %s289
      %s291 = smul.addr %s290, 8
      %s292 = scalar_lea.vmem %s1, %s291
      %s293 = smul.u32 2, %s20
      %s294 = smul.u32 32, %s20
      %p295 = scmp.lt.s32.totalorder %s19, 1
      %s296 = scalar_select %p295, %s19, 1
      %p297 = scmp.lt.s32.totalorder %s294, 31
      %s298 = scalar_select %p297, %s294, 31
      %s299 = smul.addr %s296, 32
      %s300 = sadd.s32 %s298, %s299
      %s301 = smul.addr %s300, 8
      %s302 = scalar_lea.vmem %s4, %s301
      %s303 = smul.u32 32, %s20
      %v304 = vld [vmem:[%s276] sm:$0xff]
      %v305 = vld [vmem:[%s276 + $0x8] sm:$0xff]
      %v306 = vld [vmem:[%s276 + $0x10] sm:$0x3]
      %v307 = vld [vmem:[%s276 + $0x18] sm:$0xff]
      %v308 = vld [vmem:[%s276 + $0x20] sm:$0xff]
      %v309 = vld [vmem:[%s276 + $0x28] sm:$0x3]
      %v310 = vld [vmem:[%s276 + $0x30] sm:$0xff]
      %v311 = vld [vmem:[%s276 + $0x38] sm:$0xff]
      %v312 = vld [vmem:[%s276 + $0x40] sm:$0x3]
      %v313 = vld [vmem:[%s276 + $0x48] sm:$0xff]
      %v314 = vld [vmem:[%s276 + $0x50] sm:$0xff]
      %v315 = vld [vmem:[%s276 + $0x58] sm:$0x3]
      %v316 = vld [vmem:[%s276 + $0x60] sm:$0xff]
      %v317 = vld [vmem:[%s276 + $0x68] sm:$0xff]
      %v318 = vld [vmem:[%s276 + $0x70] sm:$0x3]
      %v319 = vld [vmem:[%s276 + $0x78] sm:$0xff]
      %v320 = vld [vmem:[%s276 + $0x80] sm:$0xff]
      %v321 = vld [vmem:[%s276 + $0x88] sm:$0x3]
      %v322 = vld [vmem:[%s276 + $0x90] sm:$0xff]
      %v323 = vld [vmem:[%s276 + $0x98] sm:$0xff]
      %v324 = vld [vmem:[%s276 + $0xa0] sm:$0x3]
      %v325 = vld [vmem:[%s276 + $0xa8] sm:$0xff]
      %v326 = vld [vmem:[%s276 + $0xb0] sm:$0xff]
      %v327 = vld [vmem:[%s276 + $0xb8] sm:$0x3]
      %v328 = vld [vmem:[%s276 + $0xc0] sm:$0xff]
      %v329 = vld [vmem:[%s276 + $0xc8] sm:$0xff]
      %v330 = vld [vmem:[%s276 + $0xd0] sm:$0x3]
      %v331 = vld [vmem:[%s276 + $0xd8] sm:$0xff]
      %v332 = vld [vmem:[%s276 + $0xe0] sm:$0xff]
      %v333 = vld [vmem:[%s276 + $0xe8] sm:$0x3]
      %v334 = vld [vmem:[%s276 + $0xf0] sm:$0xff]
      %v335 = vld [vmem:[%s276 + $0xf8] sm:$0xff]
      %v336 = vld [vmem:[%s276 + $0x100] sm:$0x3]
      %v337 = vld [vmem:[%s276 + $0x108] sm:$0xff]
      %v338 = vld [vmem:[%s276 + $0x110] sm:$0xff]
      %v339 = vld [vmem:[%s276 + $0x118] sm:$0x3]
      %v340 = vld [vmem:[%s276 + $0x120] sm:$0xff]
      %v341 = vld [vmem:[%s276 + $0x128] sm:$0xff]
      %v342 = vld [vmem:[%s276 + $0x130] sm:$0x3]
      %v343 = vld [vmem:[%s276 + $0x138] sm:$0xff]
      %v344 = vld [vmem:[%s276 + $0x140] sm:$0xff]
      %v345 = vld [vmem:[%s276 + $0x148] sm:$0x3]
      %v346 = vld [vmem:[%s276 + $0x150] sm:$0xff]
      %v347 = vld [vmem:[%s276 + $0x158] sm:$0xff]
      %v348 = vld [vmem:[%s276 + $0x160] sm:$0x3]
      %v349 = vld [vmem:[%s276 + $0x168] sm:$0xff]
      %v350 = vld [vmem:[%s276 + $0x170] sm:$0xff]
      %v351 = vld [vmem:[%s276 + $0x178] sm:$0x3]
      %v352 = vld [vmem:[%s292] sm:$0xff]
      %v353 = vld [vmem:[%s292 + $0x8] sm:$0xff]
      %v354 = vld [vmem:[%s292 + $0x10] sm:$0x3]
      %v355 = vld [vmem:[%s292 + $0x18] sm:$0xff]
      %v356 = vld [vmem:[%s292 + $0x20] sm:$0xff]
      %v357 = vld [vmem:[%s292 + $0x28] sm:$0x3]
      %vm406 = vcmask 1046528
      %v407 = vrot.slane %v304, 1
      %v408 = vrot.slane %v305, 1
      %v409 = vsel %vm406, %v407, %v408
      %v410 = vrot.slane %v306, 1
      %v411 = vsel %vm406, %v408, %v410
      %v412 = vrot.slane %v307, 1
      %v413 = vrot.slane %v308, 1
      %v414 = vsel %vm406, %v412, %v413
      %v415 = vrot.slane %v309, 1
      %v416 = vsel %vm406, %v413, %v415
      %v417 = vrot.slane %v310, 1
      %v418 = vrot.slane %v311, 1
      %v419 = vsel %vm406, %v417, %v418
      %v420 = vrot.slane %v312, 1
      %v421 = vsel %vm406, %v418, %v420
      %v422 = vrot.slane %v313, 1
      %v423 = vrot.slane %v314, 1
      %v424 = vsel %vm406, %v422, %v423
      %v425 = vrot.slane %v315, 1
      %v426 = vsel %vm406, %v423, %v425
      %v427 = vrot.slane %v316, 1
      %v428 = vrot.slane %v317, 1
      %v429 = vsel %vm406, %v427, %v428
      %v430 = vrot.slane %v318, 1
      %v431 = vsel %vm406, %v428, %v430
      %v432 = vrot.slane %v319, 1
      %v433 = vrot.slane %v320, 1
      %v434 = vsel %vm406, %v432, %v433
      %v435 = vrot.slane %v321, 1
      %v436 = vsel %vm406, %v433, %v435
      %v437 = vrot.slane %v322, 1
      %v438 = vrot.slane %v323, 1
      %v439 = vsel %vm406, %v437, %v438
      %v440 = vrot.slane %v324, 1
      %v441 = vsel %vm406, %v438, %v440
      %v442 = vrot.slane %v325, 1
      %v443 = vrot.slane %v326, 1
      %v444 = vsel %vm406, %v442, %v443
      %v445 = vrot.slane %v327, 1
      %v446 = vsel %vm406, %v443, %v445
      %v447 = vrot.slane %v328, 1
      %v448 = vrot.slane %v329, 1
      %v449 = vsel %vm406, %v447, %v448
      %v450 = vrot.slane %v330, 1
      %v451 = vsel %vm406, %v448, %v450
      %v452 = vrot.slane %v331, 1
      %v453 = vrot.slane %v332, 1
      %v454 = vsel %vm406, %v452, %v453
      %v455 = vrot.slane %v333, 1
      %v456 = vsel %vm406, %v453, %v455
      %v457 = vrot.slane %v334, 1
      %v458 = vrot.slane %v335, 1
      %v459 = vsel %vm406, %v457, %v458
      %v460 = vrot.slane %v336, 1
      %v461 = vsel %vm406, %v458, %v460
      %v462 = vrot.slane %v337, 1
      %v463 = vrot.slane %v338, 1
      %v464 = vsel %vm406, %v462, %v463
      %v465 = vrot.slane %v339, 1
      %v466 = vsel %vm406, %v463, %v465
      %v467 = vrot.slane %v340, 1
      %v468 = vrot.slane %v341, 1
      %v469 = vsel %vm406, %v467, %v468
      %v470 = vrot.slane %v342, 1
      %v471 = vsel %vm406, %v468, %v470
      %v472 = vrot.slane %v343, 1
      %v473 = vrot.slane %v344, 1
      %v474 = vsel %vm406, %v472, %v473
      %v475 = vrot.slane %v345, 1
      %v476 = vsel %vm406, %v473, %v475
      %v477 = vrot.slane %v346, 1
      %v478 = vrot.slane %v347, 1
      %v479 = vsel %vm406, %v477, %v478
      %v480 = vrot.slane %v348, 1
      %v481 = vsel %vm406, %v478, %v480
      %v482 = vrot.slane %v349, 1
      %v483 = vrot.slane %v350, 1
      %v484 = vsel %vm406, %v482, %v483
      %v485 = vrot.slane %v351, 1
      %v486 = vsel %vm406, %v483, %v485
      %vm487 = vcmask 1045504
      %v488 = vrot.slane %v304, 2
      %v489 = vrot.slane %v305, 2
      %v490 = vsel %vm487, %v488, %v489
      %v491 = vrot.slane %v306, 2
      %v492 = vsel %vm487, %v489, %v491
      %v493 = vrot.slane %v307, 2
      %v494 = vrot.slane %v308, 2
      %v495 = vsel %vm487, %v493, %v494
      %v496 = vrot.slane %v309, 2
      %v497 = vsel %vm487, %v494, %v496
      %v498 = vrot.slane %v310, 2
      %v499 = vrot.slane %v311, 2
      %v500 = vsel %vm487, %v498, %v499
      %v501 = vrot.slane %v312, 2
      %v502 = vsel %vm487, %v499, %v501
      %v503 = vrot.slane %v313, 2
      %v504 = vrot.slane %v314, 2
      %v505 = vsel %vm487, %v503, %v504
      %v506 = vrot.slane %v315, 2
      %v507 = vsel %vm487, %v504, %v506
      %v508 = vrot.slane %v316, 2
      %v509 = vrot.slane %v317, 2
      %v510 = vsel %vm487, %v508, %v509
      %v511 = vrot.slane %v318, 2
      %v512 = vsel %vm487, %v509, %v511
      %v513 = vrot.slane %v319, 2
      %v514 = vrot.slane %v320, 2
      %v515 = vsel %vm487, %v513, %v514
      %v516 = vrot.slane %v321, 2
      %v517 = vsel %vm487, %v514, %v516
      %v518 = vrot.slane %v322, 2
      %v519 = vrot.slane %v323, 2
      %v520 = vsel %vm487, %v518, %v519
      %v521 = vrot.slane %v324, 2
      %v522 = vsel %vm487, %v519, %v521
      %v523 = vrot.slane %v325, 2
      %v524 = vrot.slane %v326, 2
      %v525 = vsel %vm487, %v523, %v524
      %v526 = vrot.slane %v327, 2
      %v527 = vsel %vm487, %v524, %v526
      %v528 = vrot.slane %v328, 2
      %v529 = vrot.slane %v329, 2
      %v530 = vsel %vm487, %v528, %v529
      %v531 = vrot.slane %v330, 2
      %v532 = vsel %vm487, %v529, %v531
      %v533 = vrot.slane %v331, 2
      %v534 = vrot.slane %v332, 2
      %v535 = vsel %vm487, %v533, %v534
      %v536 = vrot.slane %v333, 2
      %v537 = vsel %vm487, %v534, %v536
      %v538 = vrot.slane %v334, 2
      %v539 = vrot.slane %v335, 2
      %v540 = vsel %vm487, %v538, %v539
      %v541 = vrot.slane %v336, 2
      %v542 = vsel %vm487, %v539, %v541
      %v543 = vrot.slane %v337, 2
      %v544 = vrot.slane %v338, 2
      %v545 = vsel %vm487, %v543, %v544
      %v546 = vrot.slane %v339, 2
      %v547 = vsel %vm487, %v544, %v546
      %v548 = vrot.slane %v340, 2
      %v549 = vrot.slane %v341, 2
      %v550 = vsel %vm487, %v548, %v549
      %v551 = vrot.slane %v342, 2
      %v552 = vsel %vm487, %v549, %v551
      %v553 = vrot.slane %v343, 2
      %v554 = vrot.slane %v344, 2
      %v555 = vsel %vm487, %v553, %v554
      %v556 = vrot.slane %v345, 2
      %v557 = vsel %vm487, %v554, %v556
      %v558 = vrot.slane %v346, 2
      %v559 = vrot.slane %v347, 2
      %v560 = vsel %vm487, %v558, %v559
      %v561 = vrot.slane %v348, 2
      %v562 = vsel %vm487, %v559, %v561
      %v563 = vrot.slane %v349, 2
      %v564 = vrot.slane %v350, 2
      %v565 = vsel %vm487, %v563, %v564
      %v566 = vrot.slane %v351, 2
      %v567 = vsel %vm487, %v564, %v566
      %v571 = vrot.slane %v352, 1
      %v572 = vrot.slane %v353, 1
      %v573 = vsel %vm406, %v571, %v572
      %v574 = vrot.slane %v354, 1
      %v575 = vsel %vm406, %v572, %v574
      %v576 = vrot.slane %v352, 2
      %v577 = vrot.slane %v353, 2
      %v578 = vsel %vm487, %v576, %v577
      %v579 = vrot.slane %v354, 2
      %v580 = vsel %vm487, %v577, %v579
      %v584 = vrot.slane %v355, 1
      %v585 = vrot.slane %v356, 1
      %v586 = vsel %vm406, %v584, %v585
      %v587 = vrot.slane %v357, 1
      %v588 = vsel %vm406, %v585, %v587
      %v589 = vrot.slane %v355, 2
      %v590 = vrot.slane %v356, 2
      %v591 = vsel %vm487, %v589, %v590
      %v592 = vrot.slane %v357, 2
      %v593 = vsel %vm487, %v590, %v592
      %594 = vrot.lane.b32.xlu0 %v409, 4
      %v595 = vpop.permute.xlu0 %594
      %596 = vrot.lane.b32.xlu0 %v411, 4
      %v597 = vpop.permute.xlu0 %596
      %598 = vrot.lane.b32.xlu0 %v414, 4
      %v599 = vpop.permute.xlu0 %598
      %600 = vrot.lane.b32.xlu0 %v416, 4
      %v601 = vpop.permute.xlu0 %600
      %602 = vrot.lane.b32.xlu0 %v419, 4
      %v603 = vpop.permute.xlu0 %602
      %604 = vrot.lane.b32.xlu0 %v421, 4
      %v605 = vpop.permute.xlu0 %604
      %606 = vrot.lane.b32.xlu0 %v424, 4
      %v607 = vpop.permute.xlu0 %606
      %608 = vrot.lane.b32.xlu0 %v426, 4
      %v609 = vpop.permute.xlu0 %608
      %610 = vrot.lane.b32.xlu0 %v429, 4
      %v611 = vpop.permute.xlu0 %610
      %612 = vrot.lane.b32.xlu0 %v431, 4
      %v613 = vpop.permute.xlu0 %612
      %614 = vrot.lane.b32.xlu0 %v434, 4
      %v615 = vpop.permute.xlu0 %614
      %616 = vrot.lane.b32.xlu0 %v436, 4
      %v617 = vpop.permute.xlu0 %616
      %618 = vrot.lane.b32.xlu0 %v439, 4
      %v619 = vpop.permute.xlu0 %618
      %620 = vrot.lane.b32.xlu0 %v441, 4
      %v621 = vpop.permute.xlu0 %620
      %622 = vrot.lane.b32.xlu0 %v444, 4
      %v623 = vpop.permute.xlu0 %622
      %624 = vrot.lane.b32.xlu0 %v446, 4
      %v625 = vpop.permute.xlu0 %624
      %626 = vrot.lane.b32.xlu0 %v449, 4
      %v627 = vpop.permute.xlu0 %626
      %628 = vrot.lane.b32.xlu0 %v451, 4
      %v629 = vpop.permute.xlu0 %628
      %630 = vrot.lane.b32.xlu0 %v454, 4
      %v631 = vpop.permute.xlu0 %630
      %632 = vrot.lane.b32.xlu0 %v456, 4
      %v633 = vpop.permute.xlu0 %632
      %634 = vrot.lane.b32.xlu0 %v459, 4
      %v635 = vpop.permute.xlu0 %634
      %636 = vrot.lane.b32.xlu0 %v461, 4
      %v637 = vpop.permute.xlu0 %636
      %638 = vrot.lane.b32.xlu0 %v464, 4
      %v639 = vpop.permute.xlu0 %638
      %640 = vrot.lane.b32.xlu0 %v466, 4
      %v641 = vpop.permute.xlu0 %640
      %642 = vrot.lane.b32.xlu0 %v469, 4
      %v643 = vpop.permute.xlu0 %642
      %644 = vrot.lane.b32.xlu0 %v471, 4
      %v645 = vpop.permute.xlu0 %644
      %646 = vrot.lane.b32.xlu0 %v474, 4
      %v647 = vpop.permute.xlu0 %646
      %648 = vrot.lane.b32.xlu0 %v476, 4
      %v649 = vpop.permute.xlu0 %648
      %650 = vrot.lane.b32.xlu0 %v479, 4
      %v651 = vpop.permute.xlu0 %650
      %652 = vrot.lane.b32.xlu0 %v481, 4
      %v653 = vpop.permute.xlu0 %652
      %654 = vrot.lane.b32.xlu0 %v484, 4
      %v655 = vpop.permute.xlu0 %654
      %656 = vrot.lane.b32.xlu0 %v486, 4
      %v657 = vpop.permute.xlu0 %656
      %690 = vrot.lane.b32.xlu0 %v490, 8
      %v691 = vpop.permute.xlu0 %690
      %692 = vrot.lane.b32.xlu0 %v492, 8
      %v693 = vpop.permute.xlu0 %692
      %694 = vrot.lane.b32.xlu0 %v495, 8
      %v695 = vpop.permute.xlu0 %694
      %696 = vrot.lane.b32.xlu0 %v497, 8
      %v697 = vpop.permute.xlu0 %696
      %698 = vrot.lane.b32.xlu0 %v500, 8
      %v699 = vpop.permute.xlu0 %698
      %700 = vrot.lane.b32.xlu0 %v502, 8
      %v701 = vpop.permute.xlu0 %700
      %702 = vrot.lane.b32.xlu0 %v505, 8
      %v703 = vpop.permute.xlu0 %702
      %704 = vrot.lane.b32.xlu0 %v507, 8
      %v705 = vpop.permute.xlu0 %704
      %706 = vrot.lane.b32.xlu0 %v510, 8
      %v707 = vpop.permute.xlu0 %706
      %708 = vrot.lane.b32.xlu0 %v512, 8
      %v709 = vpop.permute.xlu0 %708
      %710 = vrot.lane.b32.xlu0 %v515, 8
      %v711 = vpop.permute.xlu0 %710
      %712 = vrot.lane.b32.xlu0 %v517, 8
      %v713 = vpop.permute.xlu0 %712
      %714 = vrot.lane.b32.xlu0 %v520, 8
      %v715 = vpop.permute.xlu0 %714
      %716 = vrot.lane.b32.xlu0 %v522, 8
      %v717 = vpop.permute.xlu0 %716
      %718 = vrot.lane.b32.xlu0 %v525, 8
      %v719 = vpop.permute.xlu0 %718
      %720 = vrot.lane.b32.xlu0 %v527, 8
      %v721 = vpop.permute.xlu0 %720
      %722 = vrot.lane.b32.xlu0 %v530, 8
      %v723 = vpop.permute.xlu0 %722
      %724 = vrot.lane.b32.xlu0 %v532, 8
      %v725 = vpop.permute.xlu0 %724
      %726 = vrot.lane.b32.xlu0 %v535, 8
      %v727 = vpop.permute.xlu0 %726
      %728 = vrot.lane.b32.xlu0 %v537, 8
      %v729 = vpop.permute.xlu0 %728
      %730 = vrot.lane.b32.xlu0 %v540, 8
      %v731 = vpop.permute.xlu0 %730
      %732 = vrot.lane.b32.xlu0 %v542, 8
      %v733 = vpop.permute.xlu0 %732
      %734 = vrot.lane.b32.xlu0 %v545, 8
      %v735 = vpop.permute.xlu0 %734
      %736 = vrot.lane.b32.xlu0 %v547, 8
      %v737 = vpop.permute.xlu0 %736
      %738 = vrot.lane.b32.xlu0 %v550, 8
      %v739 = vpop.permute.xlu0 %738
      %740 = vrot.lane.b32.xlu0 %v552, 8
      %v741 = vpop.permute.xlu0 %740
      %742 = vrot.lane.b32.xlu0 %v555, 8
      %v743 = vpop.permute.xlu0 %742
      %744 = vrot.lane.b32.xlu0 %v557, 8
      %v745 = vpop.permute.xlu0 %744
      %746 = vrot.lane.b32.xlu0 %v560, 8
      %v747 = vpop.permute.xlu0 %746
      %748 = vrot.lane.b32.xlu0 %v562, 8
      %v749 = vpop.permute.xlu0 %748
      %750 = vrot.lane.b32.xlu0 %v565, 8
      %v751 = vpop.permute.xlu0 %750
      %752 = vrot.lane.b32.xlu0 %v567, 8
      %v753 = vpop.permute.xlu0 %752
      %786 = vrot.lane.b32.xlu0 %v307, 12
      %v787 = vpop.permute.xlu0 %786
      %788 = vrot.lane.b32.xlu0 %v308, 12
      %v789 = vpop.permute.xlu0 %788
      %790 = vrot.lane.b32.xlu0 %v310, 12
      %v791 = vpop.permute.xlu0 %790
      %792 = vrot.lane.b32.xlu0 %v311, 12
      %v793 = vpop.permute.xlu0 %792
      %794 = vrot.lane.b32.xlu0 %v313, 12
      %v795 = vpop.permute.xlu0 %794
      %796 = vrot.lane.b32.xlu0 %v314, 12
      %v797 = vpop.permute.xlu0 %796
      %798 = vrot.lane.b32.xlu0 %v316, 12
      %v799 = vpop.permute.xlu0 %798
      %800 = vrot.lane.b32.xlu0 %v317, 12
      %v801 = vpop.permute.xlu0 %800
      %802 = vrot.lane.b32.xlu0 %v319, 12
      %v803 = vpop.permute.xlu0 %802
      %804 = vrot.lane.b32.xlu0 %v320, 12
      %v805 = vpop.permute.xlu0 %804
      %806 = vrot.lane.b32.xlu0 %v322, 12
      %v807 = vpop.permute.xlu0 %806
      %808 = vrot.lane.b32.xlu0 %v323, 12
      %v809 = vpop.permute.xlu0 %808
      %810 = vrot.lane.b32.xlu0 %v325, 12
      %v811 = vpop.permute.xlu0 %810
      %812 = vrot.lane.b32.xlu0 %v326, 12
      %v813 = vpop.permute.xlu0 %812
      %814 = vrot.lane.b32.xlu0 %v328, 12
      %v815 = vpop.permute.xlu0 %814
      %816 = vrot.lane.b32.xlu0 %v329, 12
      %v817 = vpop.permute.xlu0 %816
      %818 = vrot.lane.b32.xlu0 %v331, 12
      %v819 = vpop.permute.xlu0 %818
      %820 = vrot.lane.b32.xlu0 %v332, 12
      %v821 = vpop.permute.xlu0 %820
      %822 = vrot.lane.b32.xlu0 %v334, 12
      %v823 = vpop.permute.xlu0 %822
      %824 = vrot.lane.b32.xlu0 %v335, 12
      %v825 = vpop.permute.xlu0 %824
      %826 = vrot.lane.b32.xlu0 %v337, 12
      %v827 = vpop.permute.xlu0 %826
      %828 = vrot.lane.b32.xlu0 %v338, 12
      %v829 = vpop.permute.xlu0 %828
      %830 = vrot.lane.b32.xlu0 %v340, 12
      %v831 = vpop.permute.xlu0 %830
      %832 = vrot.lane.b32.xlu0 %v341, 12
      %v833 = vpop.permute.xlu0 %832
      %834 = vrot.lane.b32.xlu0 %v343, 12
      %v835 = vpop.permute.xlu0 %834
      %836 = vrot.lane.b32.xlu0 %v344, 12
      %v837 = vpop.permute.xlu0 %836
      %838 = vrot.lane.b32.xlu0 %v346, 12
      %v839 = vpop.permute.xlu0 %838
      %840 = vrot.lane.b32.xlu0 %v347, 12
      %v841 = vpop.permute.xlu0 %840
      %842 = vrot.lane.b32.xlu0 %v349, 12
      %v843 = vpop.permute.xlu0 %842
      %844 = vrot.lane.b32.xlu0 %v350, 12
      %v845 = vpop.permute.xlu0 %844
      %846 = vrot.lane.b32.xlu0 %v352, 12
      %v847 = vpop.permute.xlu0 %846
      %848 = vrot.lane.b32.xlu0 %v353, 12
      %v849 = vpop.permute.xlu0 %848
      %882 = vrot.lane.b32.xlu0 %v414, 16
      %v883 = vpop.permute.xlu0 %882
      %884 = vrot.lane.b32.xlu0 %v416, 16
      %v885 = vpop.permute.xlu0 %884
      %886 = vrot.lane.b32.xlu0 %v419, 16
      %v887 = vpop.permute.xlu0 %886
      %888 = vrot.lane.b32.xlu0 %v421, 16
      %v889 = vpop.permute.xlu0 %888
      %890 = vrot.lane.b32.xlu0 %v424, 16
      %v891 = vpop.permute.xlu0 %890
      %892 = vrot.lane.b32.xlu0 %v426, 16
      %v893 = vpop.permute.xlu0 %892
      %894 = vrot.lane.b32.xlu0 %v429, 16
      %v895 = vpop.permute.xlu0 %894
      %896 = vrot.lane.b32.xlu0 %v431, 16
      %v897 = vpop.permute.xlu0 %896
      %898 = vrot.lane.b32.xlu0 %v434, 16
      %v899 = vpop.permute.xlu0 %898
      %900 = vrot.lane.b32.xlu0 %v436, 16
      %v901 = vpop.permute.xlu0 %900
      %902 = vrot.lane.b32.xlu0 %v439, 16
      %v903 = vpop.permute.xlu0 %902
      %904 = vrot.lane.b32.xlu0 %v441, 16
      %v905 = vpop.permute.xlu0 %904
      %906 = vrot.lane.b32.xlu0 %v444, 16
      %v907 = vpop.permute.xlu0 %906
      %908 = vrot.lane.b32.xlu0 %v446, 16
      %v909 = vpop.permute.xlu0 %908
      %910 = vrot.lane.b32.xlu0 %v449, 16
      %v911 = vpop.permute.xlu0 %910
      %912 = vrot.lane.b32.xlu0 %v451, 16
      %v913 = vpop.permute.xlu0 %912
      %914 = vrot.lane.b32.xlu0 %v454, 16
      %v915 = vpop.permute.xlu0 %914
      %916 = vrot.lane.b32.xlu0 %v456, 16
      %v917 = vpop.permute.xlu0 %916
      %918 = vrot.lane.b32.xlu0 %v459, 16
      %v919 = vpop.permute.xlu0 %918
      %920 = vrot.lane.b32.xlu0 %v461, 16
      %v921 = vpop.permute.xlu0 %920
      %922 = vrot.lane.b32.xlu0 %v464, 16
      %v923 = vpop.permute.xlu0 %922
      %924 = vrot.lane.b32.xlu0 %v466, 16
      %v925 = vpop.permute.xlu0 %924
      %926 = vrot.lane.b32.xlu0 %v469, 16
      %v927 = vpop.permute.xlu0 %926
      %928 = vrot.lane.b32.xlu0 %v471, 16
      %v929 = vpop.permute.xlu0 %928
      %930 = vrot.lane.b32.xlu0 %v474, 16
      %v931 = vpop.permute.xlu0 %930
      %932 = vrot.lane.b32.xlu0 %v476, 16
      %v933 = vpop.permute.xlu0 %932
      %934 = vrot.lane.b32.xlu0 %v479, 16
      %v935 = vpop.permute.xlu0 %934
      %936 = vrot.lane.b32.xlu0 %v481, 16
      %v937 = vpop.permute.xlu0 %936
      %938 = vrot.lane.b32.xlu0 %v484, 16
      %v939 = vpop.permute.xlu0 %938
      %940 = vrot.lane.b32.xlu0 %v486, 16
      %v941 = vpop.permute.xlu0 %940
      %942 = vrot.lane.b32.xlu0 %v573, 16
      %v943 = vpop.permute.xlu0 %942
      %944 = vrot.lane.b32.xlu0 %v575, 16
      %v945 = vpop.permute.xlu0 %944
      %978 = vrot.lane.b32.xlu0 %v495, 20
      %v979 = vpop.permute.xlu0 %978
      %980 = vrot.lane.b32.xlu0 %v497, 20
      %v981 = vpop.permute.xlu0 %980
      %982 = vrot.lane.b32.xlu0 %v500, 20
      %v983 = vpop.permute.xlu0 %982
      %984 = vrot.lane.b32.xlu0 %v502, 20
      %v985 = vpop.permute.xlu0 %984
      %986 = vrot.lane.b32.xlu0 %v505, 20
      %v987 = vpop.permute.xlu0 %986
      %988 = vrot.lane.b32.xlu0 %v507, 20
      %v989 = vpop.permute.xlu0 %988
      %990 = vrot.lane.b32.xlu0 %v510, 20
      %v991 = vpop.permute.xlu0 %990
      %992 = vrot.lane.b32.xlu0 %v512, 20
      %v993 = vpop.permute.xlu0 %992
      %994 = vrot.lane.b32.xlu0 %v515, 20
      %v995 = vpop.permute.xlu0 %994
      %996 = vrot.lane.b32.xlu0 %v517, 20
      %v997 = vpop.permute.xlu0 %996
      %998 = vrot.lane.b32.xlu0 %v520, 20
      %v999 = vpop.permute.xlu0 %998
      %1000 = vrot.lane.b32.xlu0 %v522, 20
      %v1001 = vpop.permute.xlu0 %1000
      %1002 = vrot.lane.b32.xlu0 %v525, 20
      %v1003 = vpop.permute.xlu0 %1002
      %1004 = vrot.lane.b32.xlu0 %v527, 20
      %v1005 = vpop.permute.xlu0 %1004
      %1006 = vrot.lane.b32.xlu0 %v530, 20
      %v1007 = vpop.permute.xlu0 %1006
      %1008 = vrot.lane.b32.xlu0 %v532, 20
      %v1009 = vpop.permute.xlu0 %1008
      %1010 = vrot.lane.b32.xlu0 %v535, 20
      %v1011 = vpop.permute.xlu0 %1010
      %1012 = vrot.lane.b32.xlu0 %v537, 20
      %v1013 = vpop.permute.xlu0 %1012
      %1014 = vrot.lane.b32.xlu0 %v540, 20
      %v1015 = vpop.permute.xlu0 %1014
      %1016 = vrot.lane.b32.xlu0 %v542, 20
      %v1017 = vpop.permute.xlu0 %1016
      %1018 = vrot.lane.b32.xlu0 %v545, 20
      %v1019 = vpop.permute.xlu0 %1018
      %1020 = vrot.lane.b32.xlu0 %v547, 20
      %v1021 = vpop.permute.xlu0 %1020
      %1022 = vrot.lane.b32.xlu0 %v550, 20
      %v1023 = vpop.permute.xlu0 %1022
      %1024 = vrot.lane.b32.xlu0 %v552, 20
      %v1025 = vpop.permute.xlu0 %1024
      %1026 = vrot.lane.b32.xlu0 %v555, 20
      %v1027 = vpop.permute.xlu0 %1026
      %1028 = vrot.lane.b32.xlu0 %v557, 20
      %v1029 = vpop.permute.xlu0 %1028
      %1030 = vrot.lane.b32.xlu0 %v560, 20
      %v1031 = vpop.permute.xlu0 %1030
      %1032 = vrot.lane.b32.xlu0 %v562, 20
      %v1033 = vpop.permute.xlu0 %1032
      %1034 = vrot.lane.b32.xlu0 %v565, 20
      %v1035 = vpop.permute.xlu0 %1034
      %1036 = vrot.lane.b32.xlu0 %v567, 20
      %v1037 = vpop.permute.xlu0 %1036
      %1038 = vrot.lane.b32.xlu0 %v578, 20
      %v1039 = vpop.permute.xlu0 %1038
      %1040 = vrot.lane.b32.xlu0 %v580, 20
      %v1041 = vpop.permute.xlu0 %1040
      %1074 = vrot.lane.b32.xlu0 %v310, 24
      %v1075 = vpop.permute.xlu0 %1074
      %1076 = vrot.lane.b32.xlu0 %v311, 24
      %v1077 = vpop.permute.xlu0 %1076
      %1078 = vrot.lane.b32.xlu0 %v313, 24
      %v1079 = vpop.permute.xlu0 %1078
      %1080 = vrot.lane.b32.xlu0 %v314, 24
      %v1081 = vpop.permute.xlu0 %1080
      %1082 = vrot.lane.b32.xlu0 %v316, 24
      %v1083 = vpop.permute.xlu0 %1082
      %1084 = vrot.lane.b32.xlu0 %v317, 24
      %v1085 = vpop.permute.xlu0 %1084
      %1086 = vrot.lane.b32.xlu0 %v319, 24
      %v1087 = vpop.permute.xlu0 %1086
      %1088 = vrot.lane.b32.xlu0 %v320, 24
      %v1089 = vpop.permute.xlu0 %1088
      %1090 = vrot.lane.b32.xlu0 %v322, 24
      %v1091 = vpop.permute.xlu0 %1090
      %1092 = vrot.lane.b32.xlu0 %v323, 24
      %v1093 = vpop.permute.xlu0 %1092
      %1094 = vrot.lane.b32.xlu0 %v325, 24
      %v1095 = vpop.permute.xlu0 %1094
      %1096 = vrot.lane.b32.xlu0 %v326, 24
      %v1097 = vpop.permute.xlu0 %1096
      %1098 = vrot.lane.b32.xlu0 %v328, 24
      %v1099 = vpop.permute.xlu0 %1098
      %1100 = vrot.lane.b32.xlu0 %v329, 24
      %v1101 = vpop.permute.xlu0 %1100
      %1102 = vrot.lane.b32.xlu0 %v331, 24
      %v1103 = vpop.permute.xlu0 %1102
      %1104 = vrot.lane.b32.xlu0 %v332, 24
      %v1105 = vpop.permute.xlu0 %1104
      %1106 = vrot.lane.b32.xlu0 %v334, 24
      %v1107 = vpop.permute.xlu0 %1106
      %1108 = vrot.lane.b32.xlu0 %v335, 24
      %v1109 = vpop.permute.xlu0 %1108
      %1110 = vrot.lane.b32.xlu0 %v337, 24
      %v1111 = vpop.permute.xlu0 %1110
      %1112 = vrot.lane.b32.xlu0 %v338, 24
      %v1113 = vpop.permute.xlu0 %1112
      %1114 = vrot.lane.b32.xlu0 %v340, 24
      %v1115 = vpop.permute.xlu0 %1114
      %1116 = vrot.lane.b32.xlu0 %v341, 24
      %v1117 = vpop.permute.xlu0 %1116
      %1118 = vrot.lane.b32.xlu0 %v343, 24
      %v1119 = vpop.permute.xlu0 %1118
      %1120 = vrot.lane.b32.xlu0 %v344, 24
      %v1121 = vpop.permute.xlu0 %1120
      %1122 = vrot.lane.b32.xlu0 %v346, 24
      %v1123 = vpop.permute.xlu0 %1122
      %1124 = vrot.lane.b32.xlu0 %v347, 24
      %v1125 = vpop.permute.xlu0 %1124
      %1126 = vrot.lane.b32.xlu0 %v349, 24
      %v1127 = vpop.permute.xlu0 %1126
      %1128 = vrot.lane.b32.xlu0 %v350, 24
      %v1129 = vpop.permute.xlu0 %1128
      %1130 = vrot.lane.b32.xlu0 %v352, 24
      %v1131 = vpop.permute.xlu0 %1130
      %1132 = vrot.lane.b32.xlu0 %v353, 24
      %v1133 = vpop.permute.xlu0 %1132
      %1134 = vrot.lane.b32.xlu0 %v355, 24
      %v1135 = vpop.permute.xlu0 %1134
      %1136 = vrot.lane.b32.xlu0 %v356, 24
      %v1137 = vpop.permute.xlu0 %1136
      %1170 = vrot.lane.b32.xlu0 %v419, 28
      %v1171 = vpop.permute.xlu0 %1170
      %1172 = vrot.lane.b32.xlu0 %v421, 28
      %v1173 = vpop.permute.xlu0 %1172
      %1174 = vrot.lane.b32.xlu0 %v424, 28
      %v1175 = vpop.permute.xlu0 %1174
      %1176 = vrot.lane.b32.xlu0 %v426, 28
      %v1177 = vpop.permute.xlu0 %1176
      %1178 = vrot.lane.b32.xlu0 %v429, 28
      %v1179 = vpop.permute.xlu0 %1178
      %1180 = vrot.lane.b32.xlu0 %v431, 28
      %v1181 = vpop.permute.xlu0 %1180
      %1182 = vrot.lane.b32.xlu0 %v434, 28
      %v1183 = vpop.permute.xlu0 %1182
      %1184 = vrot.lane.b32.xlu0 %v436, 28
      %v1185 = vpop.permute.xlu0 %1184
      %1186 = vrot.lane.b32.xlu0 %v439, 28
      %v1187 = vpop.permute.xlu0 %1186
      %1188 = vrot.lane.b32.xlu0 %v441, 28
      %v1189 = vpop.permute.xlu0 %1188
      %1190 = vrot.lane.b32.xlu0 %v444, 28
      %v1191 = vpop.permute.xlu0 %1190
      %1192 = vrot.lane.b32.xlu0 %v446, 28
      %v1193 = vpop.permute.xlu0 %1192
      %1194 = vrot.lane.b32.xlu0 %v449, 28
      %v1195 = vpop.permute.xlu0 %1194
      %1196 = vrot.lane.b32.xlu0 %v451, 28
      %v1197 = vpop.permute.xlu0 %1196
      %1198 = vrot.lane.b32.xlu0 %v454, 28
      %v1199 = vpop.permute.xlu0 %1198
      %1200 = vrot.lane.b32.xlu0 %v456, 28
      %v1201 = vpop.permute.xlu0 %1200
      %1202 = vrot.lane.b32.xlu0 %v459, 28
      %v1203 = vpop.permute.xlu0 %1202
      %1204 = vrot.lane.b32.xlu0 %v461, 28
      %v1205 = vpop.permute.xlu0 %1204
      %1206 = vrot.lane.b32.xlu0 %v464, 28
      %v1207 = vpop.permute.xlu0 %1206
      %1208 = vrot.lane.b32.xlu0 %v466, 28
      %v1209 = vpop.permute.xlu0 %1208
      %1210 = vrot.lane.b32.xlu0 %v469, 28
      %v1211 = vpop.permute.xlu0 %1210
      %1212 = vrot.lane.b32.xlu0 %v471, 28
      %v1213 = vpop.permute.xlu0 %1212
      %1214 = vrot.lane.b32.xlu0 %v474, 28
      %v1215 = vpop.permute.xlu0 %1214
      %1216 = vrot.lane.b32.xlu0 %v476, 28
      %v1217 = vpop.permute.xlu0 %1216
      %1218 = vrot.lane.b32.xlu0 %v479, 28
      %v1219 = vpop.permute.xlu0 %1218
      %1220 = vrot.lane.b32.xlu0 %v481, 28
      %v1221 = vpop.permute.xlu0 %1220
      %1222 = vrot.lane.b32.xlu0 %v484, 28
      %v1223 = vpop.permute.xlu0 %1222
      %1224 = vrot.lane.b32.xlu0 %v486, 28
      %v1225 = vpop.permute.xlu0 %1224
      %1226 = vrot.lane.b32.xlu0 %v573, 28
      %v1227 = vpop.permute.xlu0 %1226
      %1228 = vrot.lane.b32.xlu0 %v575, 28
      %v1229 = vpop.permute.xlu0 %1228
      %1230 = vrot.lane.b32.xlu0 %v586, 28
      %v1231 = vpop.permute.xlu0 %1230
      %1232 = vrot.lane.b32.xlu0 %v588, 28
      %v1233 = vpop.permute.xlu0 %1232
      %1266 = vrot.lane.b32.xlu0 %v500, 32
      %v1267 = vpop.permute.xlu0 %1266
      %1268 = vrot.lane.b32.xlu0 %v502, 32
      %v1269 = vpop.permute.xlu0 %1268
      %1270 = vrot.lane.b32.xlu0 %v505, 32
      %v1271 = vpop.permute.xlu0 %1270
      %1272 = vrot.lane.b32.xlu0 %v507, 32
      %v1273 = vpop.permute.xlu0 %1272
      %1274 = vrot.lane.b32.xlu0 %v510, 32
      %v1275 = vpop.permute.xlu0 %1274
      %1276 = vrot.lane.b32.xlu0 %v512, 32
      %v1277 = vpop.permute.xlu0 %1276
      %1278 = vrot.lane.b32.xlu0 %v515, 32
      %v1279 = vpop.permute.xlu0 %1278
      %1280 = vrot.lane.b32.xlu0 %v517, 32
      %v1281 = vpop.permute.xlu0 %1280
      %1282 = vrot.lane.b32.xlu0 %v520, 32
      %v1283 = vpop.permute.xlu0 %1282
      %1284 = vrot.lane.b32.xlu0 %v522, 32
      %v1285 = vpop.permute.xlu0 %1284
      %1286 = vrot.lane.b32.xlu0 %v525, 32
      %v1287 = vpop.permute.xlu0 %1286
      %1288 = vrot.lane.b32.xlu0 %v527, 32
      %v1289 = vpop.permute.xlu0 %1288
      %1290 = vrot.lane.b32.xlu0 %v530, 32
      %v1291 = vpop.permute.xlu0 %1290
      %1292 = vrot.lane.b32.xlu0 %v532, 32
      %v1293 = vpop.permute.xlu0 %1292
      %1294 = vrot.lane.b32.xlu0 %v535, 32
      %v1295 = vpop.permute.xlu0 %1294
      %1296 = vrot.lane.b32.xlu0 %v537, 32
      %v1297 = vpop.permute.xlu0 %1296
      %1298 = vrot.lane.b32.xlu0 %v540, 32
      %v1299 = vpop.permute.xlu0 %1298
      %1300 = vrot.lane.b32.xlu0 %v542, 32
      %v1301 = vpop.permute.xlu0 %1300
      %1302 = vrot.lane.b32.xlu0 %v545, 32
      %v1303 = vpop.permute.xlu0 %1302
      %1304 = vrot.lane.b32.xlu0 %v547, 32
      %v1305 = vpop.permute.xlu0 %1304
      %1306 = vrot.lane.b32.xlu0 %v550, 32
      %v1307 = vpop.permute.xlu0 %1306
      %1308 = vrot.lane.b32.xlu0 %v552, 32
      %v1309 = vpop.permute.xlu0 %1308
      %1310 = vrot.lane.b32.xlu0 %v555, 32
      %v1311 = vpop.permute.xlu0 %1310
      %1312 = vrot.lane.b32.xlu0 %v557, 32
      %v1313 = vpop.permute.xlu0 %1312
      %1314 = vrot.lane.b32.xlu0 %v560, 32
      %v1315 = vpop.permute.xlu0 %1314
      %1316 = vrot.lane.b32.xlu0 %v562, 32
      %v1317 = vpop.permute.xlu0 %1316
      %1318 = vrot.lane.b32.xlu0 %v565, 32
      %v1319 = vpop.permute.xlu0 %1318
      %1320 = vrot.lane.b32.xlu0 %v567, 32
      %v1321 = vpop.permute.xlu0 %1320
      %1322 = vrot.lane.b32.xlu0 %v578, 32
      %v1323 = vpop.permute.xlu0 %1322
      %1324 = vrot.lane.b32.xlu0 %v580, 32
      %v1325 = vpop.permute.xlu0 %1324
      %1326 = vrot.lane.b32.xlu0 %v591, 32
      %v1327 = vpop.permute.xlu0 %1326
      %1328 = vrot.lane.b32.xlu0 %v593, 32
      %v1329 = vpop.permute.xlu0 %1328
      %vm1362 = vcmask 31744
      %v1363 = vsel %vm1362, %v304, %v595
      %v1364 = vsel %vm1362, %v305, %v597
      %v1365 = vsel %vm1362, %v307, %v599
      %v1366 = vsel %vm1362, %v308, %v601
      %v1367 = vsel %vm1362, %v310, %v603
      %v1368 = vsel %vm1362, %v311, %v605
      %v1369 = vsel %vm1362, %v313, %v607
      %v1370 = vsel %vm1362, %v314, %v609
      %v1371 = vsel %vm1362, %v316, %v611
      %v1372 = vsel %vm1362, %v317, %v613
      %v1373 = vsel %vm1362, %v319, %v615
      %v1374 = vsel %vm1362, %v320, %v617
      %v1375 = vsel %vm1362, %v322, %v619
      %v1376 = vsel %vm1362, %v323, %v621
      %v1377 = vsel %vm1362, %v325, %v623
      %v1378 = vsel %vm1362, %v326, %v625
      %v1379 = vsel %vm1362, %v328, %v627
      %v1380 = vsel %vm1362, %v329, %v629
      %v1381 = vsel %vm1362, %v331, %v631
      %v1382 = vsel %vm1362, %v332, %v633
      %v1383 = vsel %vm1362, %v334, %v635
      %v1384 = vsel %vm1362, %v335, %v637
      %v1385 = vsel %vm1362, %v337, %v639
      %v1386 = vsel %vm1362, %v338, %v641
      %v1387 = vsel %vm1362, %v340, %v643
      %v1388 = vsel %vm1362, %v341, %v645
      %v1389 = vsel %vm1362, %v343, %v647
      %v1390 = vsel %vm1362, %v344, %v649
      %v1391 = vsel %vm1362, %v346, %v651
      %v1392 = vsel %vm1362, %v347, %v653
      %v1393 = vsel %vm1362, %v349, %v655
      %v1394 = vsel %vm1362, %v350, %v657
      %vm1395 = vcmask 64512
      %v1396 = vsel %vm1395, %v1363, %v691
      %v1397 = vsel %vm1395, %v1364, %v693
      %v1398 = vsel %vm1395, %v1365, %v695
      %v1399 = vsel %vm1395, %v1366, %v697
      %v1400 = vsel %vm1395, %v1367, %v699
      %v1401 = vsel %vm1395, %v1368, %v701
      %v1402 = vsel %vm1395, %v1369, %v703
      %v1403 = vsel %vm1395, %v1370, %v705
      %v1404 = vsel %vm1395, %v1371, %v707
      %v1405 = vsel %vm1395, %v1372, %v709
      %v1406 = vsel %vm1395, %v1373, %v711
      %v1407 = vsel %vm1395, %v1374, %v713
      %v1408 = vsel %vm1395, %v1375, %v715
      %v1409 = vsel %vm1395, %v1376, %v717
      %v1410 = vsel %vm1395, %v1377, %v719
      %v1411 = vsel %vm1395, %v1378, %v721
      %v1412 = vsel %vm1395, %v1379, %v723
      %v1413 = vsel %vm1395, %v1380, %v725
      %v1414 = vsel %vm1395, %v1381, %v727
      %v1415 = vsel %vm1395, %v1382, %v729
      %v1416 = vsel %vm1395, %v1383, %v731
      %v1417 = vsel %vm1395, %v1384, %v733
      %v1418 = vsel %vm1395, %v1385, %v735
      %v1419 = vsel %vm1395, %v1386, %v737
      %v1420 = vsel %vm1395, %v1387, %v739
      %v1421 = vsel %vm1395, %v1388, %v741
      %v1422 = vsel %vm1395, %v1389, %v743
      %v1423 = vsel %vm1395, %v1390, %v745
      %v1424 = vsel %vm1395, %v1391, %v747
      %v1425 = vsel %vm1395, %v1392, %v749
      %v1426 = vsel %vm1395, %v1393, %v751
      %v1427 = vsel %vm1395, %v1394, %v753
      %vm1428 = vcmask 97280
      %v1429 = vsel %vm1428, %v1396, %v787
      %v1430 = vsel %vm1428, %v1397, %v789
      %v1431 = vsel %vm1428, %v1398, %v791
      %v1432 = vsel %vm1428, %v1399, %v793
      %v1433 = vsel %vm1428, %v1400, %v795
      %v1434 = vsel %vm1428, %v1401, %v797
      %v1435 = vsel %vm1428, %v1402, %v799
      %v1436 = vsel %vm1428, %v1403, %v801
      %v1437 = vsel %vm1428, %v1404, %v803
      %v1438 = vsel %vm1428, %v1405, %v805
      %v1439 = vsel %vm1428, %v1406, %v807
      %v1440 = vsel %vm1428, %v1407, %v809
      %v1441 = vsel %vm1428, %v1408, %v811
      %v1442 = vsel %vm1428, %v1409, %v813
      %v1443 = vsel %vm1428, %v1410, %v815
      %v1444 = vsel %vm1428, %v1411, %v817
      %v1445 = vsel %vm1428, %v1412, %v819
      %v1446 = vsel %vm1428, %v1413, %v821
      %v1447 = vsel %vm1428, %v1414, %v823
      %v1448 = vsel %vm1428, %v1415, %v825
      %v1449 = vsel %vm1428, %v1416, %v827
      %v1450 = vsel %vm1428, %v1417, %v829
      %v1451 = vsel %vm1428, %v1418, %v831
      %v1452 = vsel %vm1428, %v1419, %v833
      %v1453 = vsel %vm1428, %v1420, %v835
      %v1454 = vsel %vm1428, %v1421, %v837
      %v1455 = vsel %vm1428, %v1422, %v839
      %v1456 = vsel %vm1428, %v1423, %v841
      %v1457 = vsel %vm1428, %v1424, %v843
      %v1458 = vsel %vm1428, %v1425, %v845
      %v1459 = vsel %vm1428, %v1426, %v847
      %v1460 = vsel %vm1428, %v1427, %v849
      %vm1461 = vcmask 130048
      %v1462 = vsel %vm1461, %v1429, %v883
      %v1463 = vsel %vm1461, %v1430, %v885
      %v1464 = vsel %vm1461, %v1431, %v887
      %v1465 = vsel %vm1461, %v1432, %v889
      %v1466 = vsel %vm1461, %v1433, %v891
      %v1467 = vsel %vm1461, %v1434, %v893
      %v1468 = vsel %vm1461, %v1435, %v895
      %v1469 = vsel %vm1461, %v1436, %v897
      %v1470 = vsel %vm1461, %v1437, %v899
      %v1471 = vsel %vm1461, %v1438, %v901
      %v1472 = vsel %vm1461, %v1439, %v903
      %v1473 = vsel %vm1461, %v1440, %v905
      %v1474 = vsel %vm1461, %v1441, %v907
      %v1475 = vsel %vm1461, %v1442, %v909
      %v1476 = vsel %vm1461, %v1443, %v911
      %v1477 = vsel %vm1461, %v1444, %v913
      %v1478 = vsel %vm1461, %v1445, %v915
      %v1479 = vsel %vm1461, %v1446, %v917
      %v1480 = vsel %vm1461, %v1447, %v919
      %v1481 = vsel %vm1461, %v1448, %v921
      %v1482 = vsel %vm1461, %v1449, %v923
      %v1483 = vsel %vm1461, %v1450, %v925
      %v1484 = vsel %vm1461, %v1451, %v927
      %v1485 = vsel %vm1461, %v1452, %v929
      %v1486 = vsel %vm1461, %v1453, %v931
      %v1487 = vsel %vm1461, %v1454, %v933
      %v1488 = vsel %vm1461, %v1455, %v935
      %v1489 = vsel %vm1461, %v1456, %v937
      %v1490 = vsel %vm1461, %v1457, %v939
      %v1491 = vsel %vm1461, %v1458, %v941
      %v1492 = vsel %vm1461, %v1459, %v943
      %v1493 = vsel %vm1461, %v1460, %v945
      %vm1494 = vcmask 162816
      %v1495 = vsel %vm1494, %v1462, %v979
      %v1496 = vsel %vm1494, %v1463, %v981
      %v1497 = vsel %vm1494, %v1464, %v983
      %v1498 = vsel %vm1494, %v1465, %v985
      %v1499 = vsel %vm1494, %v1466, %v987
      %v1500 = vsel %vm1494, %v1467, %v989
      %v1501 = vsel %vm1494, %v1468, %v991
      %v1502 = vsel %vm1494, %v1469, %v993
      %v1503 = vsel %vm1494, %v1470, %v995
      %v1504 = vsel %vm1494, %v1471, %v997
      %v1505 = vsel %vm1494, %v1472, %v999
      %v1506 = vsel %vm1494, %v1473, %v1001
      %v1507 = vsel %vm1494, %v1474, %v1003
      %v1508 = vsel %vm1494, %v1475, %v1005
      %v1509 = vsel %vm1494, %v1476, %v1007
      %v1510 = vsel %vm1494, %v1477, %v1009
      %v1511 = vsel %vm1494, %v1478, %v1011
      %v1512 = vsel %vm1494, %v1479, %v1013
      %v1513 = vsel %vm1494, %v1480, %v1015
      %v1514 = vsel %vm1494, %v1481, %v1017
      %v1515 = vsel %vm1494, %v1482, %v1019
      %v1516 = vsel %vm1494, %v1483, %v1021
      %v1517 = vsel %vm1494, %v1484, %v1023
      %v1518 = vsel %vm1494, %v1485, %v1025
      %v1519 = vsel %vm1494, %v1486, %v1027
      %v1520 = vsel %vm1494, %v1487, %v1029
      %v1521 = vsel %vm1494, %v1488, %v1031
      %v1522 = vsel %vm1494, %v1489, %v1033
      %v1523 = vsel %vm1494, %v1490, %v1035
      %v1524 = vsel %vm1494, %v1491, %v1037
      %v1525 = vsel %vm1494, %v1492, %v1039
      %v1526 = vsel %vm1494, %v1493, %v1041
      %vm1527 = vcmask 195584
      %v1528 = vsel %vm1527, %v1495, %v1075
      %v1529 = vsel %vm1527, %v1496, %v1077
      %v1530 = vsel %vm1527, %v1497, %v1079
      %v1531 = vsel %vm1527, %v1498, %v1081
      %v1532 = vsel %vm1527, %v1499, %v1083
      %v1533 = vsel %vm1527, %v1500, %v1085
      %v1534 = vsel %vm1527, %v1501, %v1087
      %v1535 = vsel %vm1527, %v1502, %v1089
      %v1536 = vsel %vm1527, %v1503, %v1091
      %v1537 = vsel %vm1527, %v1504, %v1093
      %v1538 = vsel %vm1527, %v1505, %v1095
      %v1539 = vsel %vm1527, %v1506, %v1097
      %v1540 = vsel %vm1527, %v1507, %v1099
      %v1541 = vsel %vm1527, %v1508, %v1101
      %v1542 = vsel %vm1527, %v1509, %v1103
      %v1543 = vsel %vm1527, %v1510, %v1105
      %v1544 = vsel %vm1527, %v1511, %v1107
      %v1545 = vsel %vm1527, %v1512, %v1109
      %v1546 = vsel %vm1527, %v1513, %v1111
      %v1547 = vsel %vm1527, %v1514, %v1113
      %v1548 = vsel %vm1527, %v1515, %v1115
      %v1549 = vsel %vm1527, %v1516, %v1117
      %v1550 = vsel %vm1527, %v1517, %v1119
      %v1551 = vsel %vm1527, %v1518, %v1121
      %v1552 = vsel %vm1527, %v1519, %v1123
      %v1553 = vsel %vm1527, %v1520, %v1125
      %v1554 = vsel %vm1527, %v1521, %v1127
      %v1555 = vsel %vm1527, %v1522, %v1129
      %v1556 = vsel %vm1527, %v1523, %v1131
      %v1557 = vsel %vm1527, %v1524, %v1133
      %v1558 = vsel %vm1527, %v1525, %v1135
      %v1559 = vsel %vm1527, %v1526, %v1137
      %vm1560 = vcmask 228352
      %v1561 = vsel %vm1560, %v1528, %v1171
      %v1562 = vsel %vm1560, %v1529, %v1173
      %v1563 = vsel %vm1560, %v1530, %v1175
      %v1564 = vsel %vm1560, %v1531, %v1177
      %v1565 = vsel %vm1560, %v1532, %v1179
      %v1566 = vsel %vm1560, %v1533, %v1181
      %v1567 = vsel %vm1560, %v1534, %v1183
      %v1568 = vsel %vm1560, %v1535, %v1185
      %v1569 = vsel %vm1560, %v1536, %v1187
      %v1570 = vsel %vm1560, %v1537, %v1189
      %v1571 = vsel %vm1560, %v1538, %v1191
      %v1572 = vsel %vm1560, %v1539, %v1193
      %v1573 = vsel %vm1560, %v1540, %v1195
      %v1574 = vsel %vm1560, %v1541, %v1197
      %v1575 = vsel %vm1560, %v1542, %v1199
      %v1576 = vsel %vm1560, %v1543, %v1201
      %v1577 = vsel %vm1560, %v1544, %v1203
      %v1578 = vsel %vm1560, %v1545, %v1205
      %v1579 = vsel %vm1560, %v1546, %v1207
      %v1580 = vsel %vm1560, %v1547, %v1209
      %v1581 = vsel %vm1560, %v1548, %v1211
      %v1582 = vsel %vm1560, %v1549, %v1213
      %v1583 = vsel %vm1560, %v1550, %v1215
      %v1584 = vsel %vm1560, %v1551, %v1217
      %v1585 = vsel %vm1560, %v1552, %v1219
      %v1586 = vsel %vm1560, %v1553, %v1221
      %v1587 = vsel %vm1560, %v1554, %v1223
      %v1588 = vsel %vm1560, %v1555, %v1225
      %v1589 = vsel %vm1560, %v1556, %v1227
      %v1590 = vsel %vm1560, %v1557, %v1229
      %v1591 = vsel %vm1560, %v1558, %v1231
      %v1592 = vsel %vm1560, %v1559, %v1233
      %vm1593 = vcmask 261120
      %v1594 = vsel %vm1593, %v1561, %v1267
      %v1595 = vsel %vm1593, %v1562, %v1269
      %v1596 = vsel %vm1593, %v1563, %v1271
      %v1597 = vsel %vm1593, %v1564, %v1273
      %v1598 = vsel %vm1593, %v1565, %v1275
      %v1599 = vsel %vm1593, %v1566, %v1277
      %v1600 = vsel %vm1593, %v1567, %v1279
      %v1601 = vsel %vm1593, %v1568, %v1281
      %v1602 = vsel %vm1593, %v1569, %v1283
      %v1603 = vsel %vm1593, %v1570, %v1285
      %v1604 = vsel %vm1593, %v1571, %v1287
      %v1605 = vsel %vm1593, %v1572, %v1289
      %v1606 = vsel %vm1593, %v1573, %v1291
      %v1607 = vsel %vm1593, %v1574, %v1293
      %v1608 = vsel %vm1593, %v1575, %v1295
      %v1609 = vsel %vm1593, %v1576, %v1297
      %v1610 = vsel %vm1593, %v1577, %v1299
      %v1611 = vsel %vm1593, %v1578, %v1301
      %v1612 = vsel %vm1593, %v1579, %v1303
      %v1613 = vsel %vm1593, %v1580, %v1305
      %v1614 = vsel %vm1593, %v1581, %v1307
      %v1615 = vsel %vm1593, %v1582, %v1309
      %v1616 = vsel %vm1593, %v1583, %v1311
      %v1617 = vsel %vm1593, %v1584, %v1313
      %v1618 = vsel %vm1593, %v1585, %v1315
      %v1619 = vsel %vm1593, %v1586, %v1317
      %v1620 = vsel %vm1593, %v1587, %v1319
      %v1621 = vsel %vm1593, %v1588, %v1321
      %v1622 = vsel %vm1593, %v1589, %v1323
      %v1623 = vsel %vm1593, %v1590, %v1325
      %v1624 = vsel %vm1593, %v1591, %v1327
      %v1625 = vsel %vm1593, %v1592, %v1329
      %v1626 = vld [vmem:[%s2] sm:$0xff]
      %v1627 = vld [vmem:[%s2 + $0x8] sm:$0xff]
      %v1628 = vld [vmem:[%s2 + $0x10] sm:$0xff]
      %v1629 = vld [vmem:[%s2 + $0x18] sm:$0xff]
      %v1630 = vld [vmem:[%s2 + $0x20] sm:$0xf]
      %v1631 = vld [vmem:[%s3] sm:$0x1]
      %v1633 = vlaneseq
      %v1634 = vshrl.u32 %v1633, 7
      %v1635 = vsub.s32 0, %v1634
      %v1636 = vrot.slane %v1631, %v1635
      %vm1638 = vcmask 293888
      %v1640 = vsel %vm1638, %v1594, 0
      %v1643 = vsel %vm1638, %v1595, 0
      %v1646 = vsel %vm1638, %v1596, 0
      %v1649 = vsel %vm1638, %v1597, 0
      %v1652 = vsel %vm1638, %v1598, 0
      %v1655 = vsel %vm1638, %v1599, 0
      %v1658 = vsel %vm1638, %v1600, 0
      %v1661 = vsel %vm1638, %v1601, 0
      %v1664 = vsel %vm1638, %v1602, 0
      %v1667 = vsel %vm1638, %v1603, 0
      %v1670 = vsel %vm1638, %v1604, 0
      %v1673 = vsel %vm1638, %v1605, 0
      %v1676 = vsel %vm1638, %v1606, 0
      %v1679 = vsel %vm1638, %v1607, 0
      %v1682 = vsel %vm1638, %v1608, 0
      %v1685 = vsel %vm1638, %v1609, 0
      %v1688 = vsel %vm1638, %v1610, 0
      %v1691 = vsel %vm1638, %v1611, 0
      %v1694 = vsel %vm1638, %v1612, 0
      %v1697 = vsel %vm1638, %v1613, 0
      %v1700 = vsel %vm1638, %v1614, 0
      %v1703 = vsel %vm1638, %v1615, 0
      %v1706 = vsel %vm1638, %v1616, 0
      %v1709 = vsel %vm1638, %v1617, 0
      %v1712 = vsel %vm1638, %v1618, 0
      %v1715 = vsel %vm1638, %v1619, 0
      %v1718 = vsel %vm1638, %v1620, 0
      %v1721 = vsel %vm1638, %v1621, 0
      %v1724 = vsel %vm1638, %v1622, 0
      %v1727 = vsel %vm1638, %v1623, 0
      %v1730 = vsel %vm1638, %v1624, 0
      %v1733 = vsel %vm1638, %v1625, 0
      %vm1735 = vcmask 1043456
      %v1737 = vsel %vm1735, %v1630, 0
      %1739 = vmatprep.subr.mxu0 0.0
      %1740 = vmatpush1.msra.mxu0 %v1626
      %1741 = vmatprep.subr.mxu0 0.0
      %1742 = vmatpush1.msra.mxu0 %v1627
      %1743 = vmatprep.subr.mxu0 0.0
      %1744 = vmatpush1.msra.mxu0 %v1628
      %1745 = vmatprep.subr.mxu0 0.0
      %1746 = vmatpush1.msra.mxu0 %v1629
      %1747 = vmatprep.subr.mxu0 0.0
      %1748 = vmatpush1.msra.mxu0 %v1737
      %1749 = vmatprep.subr.mxu0 0.0
      %1750 = vmatpush1.msra.mxu0 0.0
      %1751 = vmatprep.subr.mxu0 0.0
      %1752 = vmatpush1.msra.mxu0 0.0
      %1753 = vmatprep.subr.mxu0 0.0
      %1754 = vmatpush1.msra.mxu0 0.0
      %1755 = vmatprep.subr.mxu0 0.0
      %1756 = vmatpush1.msra.mxu0 0.0
      %1757 = vmatprep.subr.mxu0 0.0
      %1758 = vmatpush1.msra.mxu0 0.0
      %1759 = vmatprep.subr.mxu0 0.0
      %1760 = vmatpush1.msra.mxu0 0.0
      %1761 = vmatprep.subr.mxu0 0.0
      %1762 = vmatpush1.msra.mxu0 0.0
      %1763 = vmatprep.subr.mxu0 0.0
      %1764 = vmatpush1.msra.mxu0 0.0
      %1765 = vmatprep.subr.mxu0 0.0
      %1766 = vmatpush1.msra.mxu0 0.0
      %1767 = vmatprep.subr.mxu0 0.0
      %1768 = vmatpush1.msra.mxu0 0.0
      %1769 = vmatprep.subr.mxu0 0.0
      %1770 = vmatpush1.msra.mxu0 0.0
      %1771 = vmatprep.subr.mxu0 0.0
      %1772 = vmatpush1.msra.mxu0 0.0
      %1773 = vmatprep.subr.mxu0 0.0
      %1774 = vmatpush1.msra.mxu0 0.0
      %1775 = vmatprep.subr.mxu0 0.0
      %1776 = vmatpush1.msra.mxu0 0.0
      %1777 = vmatprep.subr.mxu0 0.0
      %1778 = vmatpush1.msra.mxu0 0.0
      %1779 = vmatprep.subr.mxu0 0.0
      %1780 = vmatpush1.msra.mxu0 0.0
      %1781 = vmatprep.subr.mxu0 0.0
      %1782 = vmatpush1.msra.mxu0 0.0
      %1783 = vmatprep.subr.mxu0 0.0
      %1784 = vmatpush1.msra.mxu0 0.0
      %1785 = vmatprep.subr.mxu0 0.0
      %1786 = vmatpush1.msra.mxu0 0.0
      %1787 = vmatprep.subr.mxu0 0.0
      %1788 = vmatpush1.msra.mxu0 0.0
      %1789 = vmatprep.subr.mxu0 0.0
      %1790 = vmatpush1.msra.mxu0 0.0
      %1791 = vmatprep.subr.mxu0 0.0
      %1792 = vmatpush1.msra.mxu0 0.0
      %1793 = vmatprep.subr.mxu0 0.0
      %1794 = vmatpush1.msra.mxu0 0.0
      %1795 = vmatprep.subr.mxu0 0.0
      %1796 = vmatpush1.msra.mxu0 0.0
      %1797 = vmatprep.subr.mxu0 0.0
      %1798 = vmatpush1.msra.mxu0 0.0
      %1799 = vmatprep.subr.mxu0 0.0
      %1800 = vmatpush1.msra.mxu0 0.0
      %1801 = vmatprep.subr.mxu0 0.0
      %1802 = vmatpush1.msra.mxu0 0.0
      %1803 = vmatprep.mubr.f32.mxu0 0.0
      %1804 = vmatmul.mubr.f32.gmra.mrb[0].mxu0 %v1640
      %v1805 = vpop.f32.mrb[0].mxu0
      %v1806 = vadd.f32 %v1636, %v1805
      %v1807 = vpop.f32.mrb[0].mxu0
      %1808 = vmatprep.mubr.f32.mxu0 0.0
      %1809 = vmatmul.mubr.f32.gmra.mrb[0].mxu0 %v1643
      %v1810 = vpop.f32.mrb[0].mxu0
      %v1811 = vadd.f32 %v1636, %v1810
      %v1812 = vpop.f32.mrb[0].mxu0
      %1813 = vmatprep.mubr.f32.mxu0 0.0
      %1814 = vmatmul.mubr.f32.gmra.mrb[0].mxu0 %v1646
      %v1815 = vpop.f32.mrb[0].mxu0
      %v1816 = vadd.f32 %v1636, %v1815
      %v1817 = vpop.f32.mrb[0].mxu0
      %1818 = vmatprep.mubr.f32.mxu0 0.0
      %1819 = vmatmul.mubr.f32.gmra.mrb[0].mxu0 %v1649
      %v1820 = vpop.f32.mrb[0].mxu0
      %v1821 = vadd.f32 %v1636, %v1820
      %v1822 = vpop.f32.mrb[0].mxu0
      %1823 = vmatprep.mubr.f32.mxu0 0.0
      %1824 = vmatmul.mubr.f32.gmra.mrb[0].mxu0 %v1652
      %v1825 = vpop.f32.mrb[0].mxu0
      %v1826 = vadd.f32 %v1636, %v1825
      %v1827 = vpop.f32.mrb[0].mxu0
      %1828 = vmatprep.mubr.f32.mxu0 0.0
      %1829 = vmatmul.mubr.f32.gmra.mrb[0].mxu0 %v1655
      %v1830 = vpop.f32.mrb[0].mxu0
      %v1831 = vadd.f32 %v1636, %v1830
      %v1832 = vpop.f32.mrb[0].mxu0
      %1833 = vmatprep.mubr.f32.mxu0 0.0
      %1834 = vmatmul.mubr.f32.gmra.mrb[0].mxu0 %v1658
      %v1835 = vpop.f32.mrb[0].mxu0
      %v1836 = vadd.f32 %v1636, %v1835
      %v1837 = vpop.f32.mrb[0].mxu0
      %1838 = vmatprep.mubr.f32.mxu0 0.0
      %1839 = vmatmul.mubr.f32.gmra.mrb[0].mxu0 %v1661
      %v1840 = vpop.f32.mrb[0].mxu0
      %v1841 = vadd.f32 %v1636, %v1840
      %v1842 = vpop.f32.mrb[0].mxu0
      %1843 = vmatprep.mubr.f32.mxu0 0.0
      %1844 = vmatmul.mubr.f32.gmra.mrb[0].mxu0 %v1664
      %v1845 = vpop.f32.mrb[0].mxu0
      %v1846 = vadd.f32 %v1636, %v1845
      %v1847 = vpop.f32.mrb[0].mxu0
      %1848 = vmatprep.mubr.f32.mxu0 0.0
      %1849 = vmatmul.mubr.f32.gmra.mrb[0].mxu0 %v1667
      %v1850 = vpop.f32.mrb[0].mxu0
      %v1851 = vadd.f32 %v1636, %v1850
      %v1852 = vpop.f32.mrb[0].mxu0
      %1853 = vmatprep.mubr.f32.mxu0 0.0
      %1854 = vmatmul.mubr.f32.gmra.mrb[0].mxu0 %v1670
      %v1855 = vpop.f32.mrb[0].mxu0
      %v1856 = vadd.f32 %v1636, %v1855
      %v1857 = vpop.f32.mrb[0].mxu0
      %1858 = vmatprep.mubr.f32.mxu0 0.0
      %1859 = vmatmul.mubr.f32.gmra.mrb[0].mxu0 %v1673
      %v1860 = vpop.f32.mrb[0].mxu0
      %v1861 = vadd.f32 %v1636, %v1860
      %v1862 = vpop.f32.mrb[0].mxu0
      %1863 = vmatprep.mubr.f32.mxu0 0.0
      %1864 = vmatmul.mubr.f32.gmra.mrb[0].mxu0 %v1676
      %v1865 = vpop.f32.mrb[0].mxu0
      %v1866 = vadd.f32 %v1636, %v1865
      %v1867 = vpop.f32.mrb[0].mxu0
      %1868 = vmatprep.mubr.f32.mxu0 0.0
      %1869 = vmatmul.mubr.f32.gmra.mrb[0].mxu0 %v1679
      %v1870 = vpop.f32.mrb[0].mxu0
      %v1871 = vadd.f32 %v1636, %v1870
      %v1872 = vpop.f32.mrb[0].mxu0
      %1873 = vmatprep.mubr.f32.mxu0 0.0
      %1874 = vmatmul.mubr.f32.gmra.mrb[0].mxu0 %v1682
      %v1875 = vpop.f32.mrb[0].mxu0
      %v1876 = vadd.f32 %v1636, %v1875
      %v1877 = vpop.f32.mrb[0].mxu0
      %1878 = vmatprep.mubr.f32.mxu0 0.0
      %1879 = vmatmul.mubr.f32.gmra.mrb[0].mxu0 %v1685
      %v1880 = vpop.f32.mrb[0].mxu0
      %v1881 = vadd.f32 %v1636, %v1880
      %v1882 = vpop.f32.mrb[0].mxu0
      %1883 = vmatprep.mubr.f32.mxu0 0.0
      %1884 = vmatmul.mubr.f32.gmra.mrb[0].mxu0 %v1688
      %v1885 = vpop.f32.mrb[0].mxu0
      %v1886 = vadd.f32 %v1636, %v1885
      %v1887 = vpop.f32.mrb[0].mxu0
      %1888 = vmatprep.mubr.f32.mxu0 0.0
      %1889 = vmatmul.mubr.f32.gmra.mrb[0].mxu0 %v1691
      %v1890 = vpop.f32.mrb[0].mxu0
      %v1891 = vadd.f32 %v1636, %v1890
      %v1892 = vpop.f32.mrb[0].mxu0
      %1893 = vmatprep.mubr.f32.mxu0 0.0
      %1894 = vmatmul.mubr.f32.gmra.mrb[0].mxu0 %v1694
      %v1895 = vpop.f32.mrb[0].mxu0
      %v1896 = vadd.f32 %v1636, %v1895
      %v1897 = vpop.f32.mrb[0].mxu0
      %1898 = vmatprep.mubr.f32.mxu0 0.0
      %1899 = vmatmul.mubr.f32.gmra.mrb[0].mxu0 %v1697
      %v1900 = vpop.f32.mrb[0].mxu0
      %v1901 = vadd.f32 %v1636, %v1900
      %v1902 = vpop.f32.mrb[0].mxu0
      %1903 = vmatprep.mubr.f32.mxu0 0.0
      %1904 = vmatmul.mubr.f32.gmra.mrb[0].mxu0 %v1700
      %v1905 = vpop.f32.mrb[0].mxu0
      %v1906 = vadd.f32 %v1636, %v1905
      %v1907 = vpop.f32.mrb[0].mxu0
      %1908 = vmatprep.mubr.f32.mxu0 0.0
      %1909 = vmatmul.mubr.f32.gmra.mrb[0].mxu0 %v1703
      %v1910 = vpop.f32.mrb[0].mxu0
      %v1911 = vadd.f32 %v1636, %v1910
      %v1912 = vpop.f32.mrb[0].mxu0
      %1913 = vmatprep.mubr.f32.mxu0 0.0
      %1914 = vmatmul.mubr.f32.gmra.mrb[0].mxu0 %v1706
      %v1915 = vpop.f32.mrb[0].mxu0
      %v1916 = vadd.f32 %v1636, %v1915
      %v1917 = vpop.f32.mrb[0].mxu0
      %1918 = vmatprep.mubr.f32.mxu0 0.0
      %1919 = vmatmul.mubr.f32.gmra.mrb[0].mxu0 %v1709
      %v1920 = vpop.f32.mrb[0].mxu0
      %v1921 = vadd.f32 %v1636, %v1920
      %v1922 = vpop.f32.mrb[0].mxu0
      %1923 = vmatprep.mubr.f32.mxu0 0.0
      %1924 = vmatmul.mubr.f32.gmra.mrb[0].mxu0 %v1712
      %v1925 = vpop.f32.mrb[0].mxu0
      %v1926 = vadd.f32 %v1636, %v1925
      %v1927 = vpop.f32.mrb[0].mxu0
      %1928 = vmatprep.mubr.f32.mxu0 0.0
      %1929 = vmatmul.mubr.f32.gmra.mrb[0].mxu0 %v1715
      %v1930 = vpop.f32.mrb[0].mxu0
      %v1931 = vadd.f32 %v1636, %v1930
      %v1932 = vpop.f32.mrb[0].mxu0
      %1933 = vmatprep.mubr.f32.mxu0 0.0
      %1934 = vmatmul.mubr.f32.gmra.mrb[0].mxu0 %v1718
      %v1935 = vpop.f32.mrb[0].mxu0
      %v1936 = vadd.f32 %v1636, %v1935
      %v1937 = vpop.f32.mrb[0].mxu0
      %1938 = vmatprep.mubr.f32.mxu0 0.0
      %1939 = vmatmul.mubr.f32.gmra.mrb[0].mxu0 %v1721
      %v1940 = vpop.f32.mrb[0].mxu0
      %v1941 = vadd.f32 %v1636, %v1940
      %v1942 = vpop.f32.mrb[0].mxu0
      %1943 = vmatprep.mubr.f32.mxu0 0.0
      %1944 = vmatmul.mubr.f32.gmra.mrb[0].mxu0 %v1724
      %v1945 = vpop.f32.mrb[0].mxu0
      %v1946 = vadd.f32 %v1636, %v1945
      %v1947 = vpop.f32.mrb[0].mxu0
      %1948 = vmatprep.mubr.f32.mxu0 0.0
      %1949 = vmatmul.mubr.f32.gmra.mrb[0].mxu0 %v1727
      %v1950 = vpop.f32.mrb[0].mxu0
      %v1951 = vadd.f32 %v1636, %v1950
      %v1952 = vpop.f32.mrb[0].mxu0
      %1953 = vmatprep.mubr.f32.mxu0 0.0
      %1954 = vmatmul.mubr.f32.gmra.mrb[0].mxu0 %v1730
      %v1955 = vpop.f32.mrb[0].mxu0
      %v1956 = vadd.f32 %v1636, %v1955
      %v1957 = vpop.f32.mrb[0].mxu0
      %1958 = vmatprep.mubr.f32.mxu0 0.0
      %1959 = vmatmul.mubr.f32.gmra.mrb[0].mxu0 %v1733
      %v1960 = vpop.f32.mrb[0].mxu0
      %v1961 = vadd.f32 %v1636, %v1960
      %v1962 = vpop.f32.mrb[0].mxu0
      %1963 = vdwg.mxu0
      %v1964 = vmax.f32 %v1806, 0.0
      %v1965 = vmax.f32 %v1811, 0.0
      %v1966 = vmax.f32 %v1816, 0.0
      %v1967 = vmax.f32 %v1821, 0.0
      %v1968 = vmax.f32 %v1826, 0.0
      %v1969 = vmax.f32 %v1831, 0.0
      %v1970 = vmax.f32 %v1836, 0.0
      %v1971 = vmax.f32 %v1841, 0.0
      %v1972 = vmax.f32 %v1846, 0.0
      %v1973 = vmax.f32 %v1851, 0.0
      %v1974 = vmax.f32 %v1856, 0.0
      %v1975 = vmax.f32 %v1861, 0.0
      %v1976 = vmax.f32 %v1866, 0.0
      %v1977 = vmax.f32 %v1871, 0.0
      %v1978 = vmax.f32 %v1876, 0.0
      %v1979 = vmax.f32 %v1881, 0.0
      %v1980 = vmax.f32 %v1886, 0.0
      %v1981 = vmax.f32 %v1891, 0.0
      %v1982 = vmax.f32 %v1896, 0.0
      %v1983 = vmax.f32 %v1901, 0.0
      %v1984 = vmax.f32 %v1906, 0.0
      %v1985 = vmax.f32 %v1911, 0.0
      %v1986 = vmax.f32 %v1916, 0.0
      %v1987 = vmax.f32 %v1921, 0.0
      %v1988 = vmax.f32 %v1926, 0.0
      %v1989 = vmax.f32 %v1931, 0.0
      %v1990 = vmax.f32 %v1936, 0.0
      %v1991 = vmax.f32 %v1941, 0.0
      %v1992 = vmax.f32 %v1946, 0.0
      %v1993 = vmax.f32 %v1951, 0.0
      %v1994 = vmax.f32 %v1956, 0.0
      %v1995 = vmax.f32 %v1961, 0.0
      %1996 = vst.msk [vmem:[%s302] sm:$0xff] %vm1395, %v1964
      %1997 = vst.msk [vmem:[%s302 + $0x8] sm:$0xff] %vm1395, %v1965
      %1998 = vst.msk [vmem:[%s302 + $0x10] sm:$0xff] %vm1395, %v1966
      %1999 = vst.msk [vmem:[%s302 + $0x18] sm:$0xff] %vm1395, %v1967
      %2000 = vst.msk [vmem:[%s302 + $0x20] sm:$0xff] %vm1395, %v1968
      %2001 = vst.msk [vmem:[%s302 + $0x28] sm:$0xff] %vm1395, %v1969
      %2002 = vst.msk [vmem:[%s302 + $0x30] sm:$0xff] %vm1395, %v1970
      %2003 = vst.msk [vmem:[%s302 + $0x38] sm:$0xff] %vm1395, %v1971
      %2004 = vst.msk [vmem:[%s302 + $0x40] sm:$0xff] %vm1395, %v1972
      %2005 = vst.msk [vmem:[%s302 + $0x48] sm:$0xff] %vm1395, %v1973
      %2006 = vst.msk [vmem:[%s302 + $0x50] sm:$0xff] %vm1395, %v1974
      %2007 = vst.msk [vmem:[%s302 + $0x58] sm:$0xff] %vm1395, %v1975
      %2008 = vst.msk [vmem:[%s302 + $0x60] sm:$0xff] %vm1395, %v1976
      %2009 = vst.msk [vmem:[%s302 + $0x68] sm:$0xff] %vm1395, %v1977
      %2010 = vst.msk [vmem:[%s302 + $0x70] sm:$0xff] %vm1395, %v1978
      %2011 = vst.msk [vmem:[%s302 + $0x78] sm:$0xff] %vm1395, %v1979
      %2012 = vst.msk [vmem:[%s302 + $0x80] sm:$0xff] %vm1395, %v1980
      %2013 = vst.msk [vmem:[%s302 + $0x88] sm:$0xff] %vm1395, %v1981
      %2014 = vst.msk [vmem:[%s302 + $0x90] sm:$0xff] %vm1395, %v1982
      %2015 = vst.msk [vmem:[%s302 + $0x98] sm:$0xff] %vm1395, %v1983
      %2016 = vst.msk [vmem:[%s302 + $0xa0] sm:$0xff] %vm1395, %v1984
      %2017 = vst.msk [vmem:[%s302 + $0xa8] sm:$0xff] %vm1395, %v1985
      %2018 = vst.msk [vmem:[%s302 + $0xb0] sm:$0xff] %vm1395, %v1986
      %2019 = vst.msk [vmem:[%s302 + $0xb8] sm:$0xff] %vm1395, %v1987
      %2020 = vst.msk [vmem:[%s302 + $0xc0] sm:$0xff] %vm1395, %v1988
      %2021 = vst.msk [vmem:[%s302 + $0xc8] sm:$0xff] %vm1395, %v1989
      %2022 = vst.msk [vmem:[%s302 + $0xd0] sm:$0xff] %vm1395, %v1990
      %2023 = vst.msk [vmem:[%s302 + $0xd8] sm:$0xff] %vm1395, %v1991
      %2024 = vst.msk [vmem:[%s302 + $0xe0] sm:$0xff] %vm1395, %v1992
      %2025 = vst.msk [vmem:[%s302 + $0xe8] sm:$0xff] %vm1395, %v1993
      %2026 = vst.msk [vmem:[%s302 + $0xf0] sm:$0xff] %vm1395, %v1994
      %2027 = vst.msk [vmem:[%s302 + $0xf8] sm:$0xff] %vm1395, %v1995
      %s2028 = smul.u32 32, %s20
      %p2029 = scmp.lt.s32.totalorder %s19, 1
      %s2030 = scalar_select %p2029, %s19, 1
      %p2031 = scmp.lt.s32.totalorder %s2028, 31
      %s2032 = scalar_select %p2031, %s2028, 31
      %s2033 = smul.addr %s2030, 32
      %s2034 = sadd.s32 %s2032, %s2033
      %s2035 = smul.addr %s2034, 8
      %s2036 = scalar_lea.vmem %s4, %s2035
      // Predicated region
      $region37: #{conv3x3_relu.1} parent=35 // pred_check
        %p2037 = pneg %p145
      $region38: #{conv3x3_relu.1} parent=35 // pred_check_branch
        %2039 = sbr.rel (%p2037) target = $region40
      $region39: #{conv3x3_relu.1} parent=35 // pred_region
        %s2040 = smul.u32 32, %s20
      $region40: #{conv3x3_relu.1} parent=35 // pred_fallthru
        _
    $region36: #{conv3x3_relu.1} parent=5 // pred_fallthru
      _
    %p2041 = scmp.le.s32.totalorder 2, %s10
    // Predicated region
    $region41: #{conv3x3_relu.1} parent=5 // pred_check
      %p2042 = pneg %p2041
    $region42: #{conv3x3_relu.1} parent=5 // pred_check_branch
      %2044 = sbr.rel (%p2042) target = $region44
    $region43: #{conv3x3_relu.1} parent=5 // pred_region
      %s2045 = ssub.s32 %s10, 2
      // Predicated region
      $region45: #{conv3x3_relu.1} parent=43 // pred_check
        %p2046 = pneg %p151
      $region46: #{conv3x3_relu.1} parent=43 // pred_check_branch
        %2048 = sbr.rel (%p2046) target = $region48
      $region47: #{conv3x3_relu.1} parent=43 // pred_region
        %s2049 = smul.u32 32, %s22
        %p2050 = scmp.lt.s32.totalorder %s21, 1
        %s2051 = scalar_select %p2050, %s21, 1
        %p2052 = scmp.lt.s32.totalorder %s2049, 31
        %s2053 = scalar_select %p2052, %s2049, 31
        %s2054 = smul.addr %s2051, 32
        %s2055 = sadd.s32 %s2053, %s2054
        %s2056 = smul.addr %s2055, 8
        %s2057 = scalar_lea.vmem %s4, %s2056
      $region48: #{conv3x3_relu.1} parent=43 // pred_fallthru
        _
    $region44: #{conv3x3_relu.1} parent=5 // pred_fallthru
      _
  $region6: #{conv3x3_relu.1} parent=0 // loop_footer
    %s14 = sadd.s32 1, %s10
  $region7: #{conv3x3_relu.1} parent=0 // loop_footer_branch
    %9 = sbr.rel target = $region3
  $region8: #{conv3x3_relu.1} parent=0 // loop_exit
    _

</llo_original>
